<compile_context>
chip_gen: v7x
topology: tpu7x:2x2x1
jax: 0.10.0
libtpu: 0.0.40
codegen_flags: <defaults>
</compile_context>

<pallas_src>
import functools

import jax
import jax.numpy as jnp
from jax import lax
from jax.experimental import pallas as pl
from jax.experimental.pallas import tpu as pltpu


def _composite_loss_kernel(*refs, n_vectors, n_scales, hw, n_rows, block_rows,
                           stripe_rows, ragged, inv_conf, inv_reg, inv_scale):
    (x_conf_ref, t_conf_ref, x_reg_ref, x_logb_ref, x_scale_ref) = refs[:5]
    t_reg_refs = refs[5:5 + n_vectors]
    t_scale_refs = refs[5 + n_vectors:5 + n_vectors + n_scales]
    out_ref = refs[5 + n_vectors + n_scales]
    acc_ref = refs[6 + n_vectors + n_scales]

    g = pl.program_id(0)
    f32 = jnp.float32
    n_stripes = block_rows // stripe_rows

    @pl.when(g == 0)
    def _init():
        acc_ref[...] = jnp.zeros_like(acc_ref)

    def stripe_body(s, carry):
        if isinstance(s, int):
            r0 = s * stripe_rows
        else:
            r0 = pl.multiple_of(s * stripe_rows, stripe_rows)
        rows = pl.ds(r0, stripe_rows)

        if ragged:
            # Only the last (partial) block has invalid rows; one select per
            # loss term (a select, NOT a multiply: garbage rows may be NaN/Inf).
            base_row = g * block_rows + r0
            row_ids = lax.broadcasted_iota(jnp.int32, (stripe_rows, hw), 0) + base_row
            valid = row_ids < n_rows
            finalize = lambda c: jnp.where(valid, c, 0.0)
        else:
            finalize = lambda c: c

        # ---------- confidence: focal(gamma=1)-weighted BCE-with-logits -------
        x = x_conf_ref[rows, :].astype(f32)
        t = t_conf_ref[rows, :].astype(f32)
        mask = jnp.logical_not(jnp.isnan(t))
        mf = mask.astype(f32)
        t_v = jnp.where(mask, t, 0.0)
        # For binary targets:  bce * focal_weight == softplus(-w) * sigmoid(-w)
        # with w = x where t==1 else -x.  Single exp + single log per element.
        w = jnp.where(t_v == 1.0, x, -x)
        e = jnp.exp(-jnp.abs(w))
        softplus_neg_w = jnp.maximum(-w, 0.0) + jnp.log1p(e)
        denom = 1.0 + e
        r = pl.reciprocal(denom, approx=True)
        r = r * (2.0 - denom * r)          # one Newton step (VPU only) -> f32 accuracy
        sigmoid_neg_w = jnp.where(w >= 0.0, e * r, r)
        acc_ref[0] = acc_ref[0] + finalize(softplus_neg_w * sigmoid_neg_w * mf)

        # ---------- localization: Laplace loss (0.1 weight folded in epilogue) -
        for i in range(n_vectors):
            base = i * 2 * hw              # 128-aligned lane offsets (hw % 128 == 0)
            x0 = x_reg_ref[rows, base:base + hw].astype(f32)
            x1 = x_reg_ref[rows, base + hw:base + 2 * hw].astype(f32)
            logb = x_logb_ref[rows, i * hw:(i + 1) * hw].astype(f32)
            t0 = t_reg_refs[i][rows, 0:hw].astype(f32)
            t1 = t_reg_refs[i][rows, hw:2 * hw].astype(f32)
            rmask = jnp.logical_not(jnp.isnan(t0))
            rmf = rmask.astype(f32)
            t0 = jnp.where(rmask, t0, 0.0)
            t1 = jnp.where(rmask, t1, 0.0)
            d0 = x0 - t0
            d1 = x1 - t1
            norm = jnp.sqrt(d0 * d0 + d1 * d1)
            lb = 3.0 * jnp.tanh(logb * (1.0 / 3.0))
            acc_ref[1 + i] = acc_ref[1 + i] + finalize(
                (0.694 + lb + norm * jnp.exp(-lb)) * rmf)

        # ---------- scales: L1(x, log(target)) ---------------------------------
        for i in range(n_scales):
            xs = x_scale_ref[rows, i * hw:(i + 1) * hw].astype(f32)
            ts = t_scale_refs[i][rows, :].astype(f32)
            smask = jnp.logical_not(jnp.isnan(ts))
            smf = smask.astype(f32)
            ts_v = jnp.where(smask, ts, 1.0)
            acc_ref[1 + n_vectors + i] = acc_ref[1 + n_vectors + i] + finalize(
                jnp.abs(xs - jnp.log(ts_v)) * smf)

        return carry

    if n_stripes == 1:
        stripe_body(0, 0)
    else:
        lax.fori_loop(0, n_stripes, stripe_body, 0)

    # ---------------- epilogue: one small cross-lane reduce per loss term -------
    @pl.when(g == pl.num_programs(0) - 1)
    def _finalize():
        out_ref[0] = jnp.sum(acc_ref[0]) * inv_conf
        for i in range(n_vectors):
            out_ref[1 + i] = jnp.sum(acc_ref[1 + i]) * inv_reg
        for i in range(n_scales):
            out_ref[1 + n_vectors + i] = jnp.sum(acc_ref[1 + n_vectors + i]) * inv_scale


def _vmem_budgets():
    """Generation-conditional VMEM tiling budget / Mosaic VMEM limit."""
    cap = None
    try:
        cap = getattr(pltpu.get_tpu_info(), "vmem_capacity_bytes", None)
    except Exception:  # pragma: no cover - query unavailable (e.g. CPU interpret)
        cap = None
    if not cap or cap <= 0:
        cap = 64 * 1024 * 1024          # conservative: v7x per-TensorCore VMEM
    budget = min(int(cap * 0.40), 64 * 1024 * 1024)       # ~51 MiB v6e, ~25 MiB v7x
    vmem_limit = min(int(cap * 0.80), 112 * 1024 * 1024)  # ~102 MiB v6e, ~51 MiB v7x
    return budget, vmem_limit


def _choose_block_rows(n_rows, hw, n_vectors, n_scales, itemsize, budget_bytes):
    """Largest multiple-of-8 row block whose double-buffered input streams fit
    the VMEM budget, preferring a block size that divides n_rows (no ragged
    path) or at least leaves a last block >= half a block."""
    if n_rows <= 8:
        return n_rows
    in_row = hw * (2 + 5 * n_vectors + 2 * n_scales) * itemsize    # bytes/row (all streams)
    acc_bytes = (1 + n_vectors + n_scales) * 8 * hw * 4            # fixed f32 accumulator
    tb = (budget_bytes - acc_bytes) // (2 * in_row)                # 2x: double-buffered DMA
    tb = max(8, (int(tb) // 8) * 8)
    tb = min(tb, max(8, (n_rows // 8) * 8))
    # Prefer a block size that divides n_rows (removes ragged masking entirely),
    # as long as it stays within 2x of the budget-derived size.
    for cand in range(tb, 7, -8):
        if n_rows % cand == 0:
            if 2 * cand >= tb:
                return cand
            break
    # Otherwise avoid a tiny last block (pure per-step overhead).
    for cand in range(tb, 7, -8):
        rem = n_rows % cand
        if rem == 0 or rem >= cand // 2:
            return cand
    return tb


def composite_loss(x_confidence, x_regs, x_logbs, x_scales,
                   t_conf, t_regs, t_scales, *, n_vectors, n_scales):
    B, C, _, H, W = x_confidence.shape
    assert x_regs.shape == (B, C, n_vectors, 2, H, W)
    assert x_logbs.shape == (B, C, n_vectors, H, W)
    assert x_scales.shape == (B, C, n_scales, H, W)
    N = B * C
    HW = H * W
    # TODO(synk): HW not a multiple of 128 would still be correct (full-dim lane
    #             blocks) but the in-kernel component slices would lose lane-tile
    #             alignment; pad spatially upstream if that case matters.
    assert HW % 128 == 0, "H*W must be a multiple of 128"

    # Contiguous reshapes only: no transpose / stack / cast materialization.
    x_conf_f = x_confidence.reshape(N, HW)                   # (B,C,1,H,W)
    t_conf_f = t_conf.reshape(N, HW)
    x_reg_f = x_regs.reshape(N, n_vectors * 2 * HW)
    x_logb_f = x_logbs.reshape(N, n_vectors * HW)
    x_scale_f = x_scales.reshape(N, n_scales * HW)
    t_reg_fs = [tr.reshape(N, 2 * HW) for tr in t_regs]
    t_scale_fs = [ts.reshape(N, HW) for ts in t_scales]

    budget_bytes, vmem_limit = _vmem_budgets()
    itemsize = max(x_confidence.dtype.itemsize, t_conf.dtype.itemsize)
    tb = _choose_block_rows(N, HW, n_vectors, n_scales, itemsize, budget_bytes)
    stripe_rows = 8 if tb >= 8 else tb
    assert tb % stripe_rows == 0
    grid = (pl.cdiv(N, tb),)
    ragged = (N % tb) != 0
    n_losses = 1 + n_vectors + n_scales

    def vspec(lanes):
        return pl.BlockSpec((tb, lanes), lambda g: (g, 0))

    in_specs = ([vspec(HW), vspec(HW), vspec(n_vectors * 2 * HW),
                 vspec(n_vectors * HW), vspec(n_scales * HW)]
                + [vspec(2 * HW)] * n_vectors
                + [vspec(HW)] * n_scales)

    kernel = functools.partial(
        _composite_loss_kernel,
        n_vectors=n_vectors, n_scales=n_scales, hw=HW,
        n_rows=N, block_rows=tb, stripe_rows=stripe_rows, ragged=ragged,
        inv_conf=1.0 / (1000.0 * B),
        inv_reg=0.1 / (100.0 * B),
        inv_scale=1.0 / (100.0 * B))

    return pl.pallas_call(
        kernel,
        out_shape=jax.ShapeDtypeStruct((n_losses,), jnp.float32),
        grid_spec=pltpu.PrefetchScalarGridSpec(
            num_scalar_prefetch=0,
            grid=grid,
            in_specs=in_specs,
            out_specs=pl.BlockSpec(memory_space=pltpu.MemorySpace.SMEM),
            scratch_shapes=[pltpu.VMEM((n_losses, stripe_rows, HW), jnp.float32)]),
        compiler_params=pltpu.CompilerParams(
            dimension_semantics=("arbitrary",),
            vmem_limit_bytes=vmem_limit),
    )(x_conf_f, t_conf_f, x_reg_f, x_logb_f, x_scale_f, *t_reg_fs, *t_scale_fs)


def reference(x_confidence, x_regs, x_logbs, x_scales,
              t_conf, t_regs, t_scales, *, n_vectors, n_scales):
    """Plain-jnp re-implementation of the PyTorch forward, for checking."""
    B = x_confidence.shape[0]
    xc = x_confidence[:, :, 0]
    mask = ~jnp.isnan(t_conf)
    tv = jnp.where(mask, t_conf, 0.0)
    bce = jnp.maximum(xc, 0.0) - xc * tv + jnp.log1p(jnp.exp(-jnp.abs(xc)))
    w = jnp.where(tv == 1.0, xc, -xc)
    fw = 1.0 / (1.0 + jnp.exp(w))
    out = [jnp.sum(bce * fw * mask) / (1000.0 * B)]
    for i in range(n_vectors):
        t0 = t_regs[i][:, :, 0]
        t1 = t_regs[i][:, :, 1]
        m = ~jnp.isnan(t0)
        t0 = jnp.where(m, t0, 0.0)
        t1 = jnp.where(m, t1, 0.0)
        x0 = x_regs[:, :, i, 0]
        x1 = x_regs[:, :, i, 1]
        lb = 3.0 * jnp.tanh(x_logbs[:, :, i] / 3.0)
        norm = jnp.sqrt((x0 - t0) ** 2 + (x1 - t1) ** 2)
        l = (0.694 + lb + norm * jnp.exp(-lb)) * 0.1 * m
        out.append(jnp.sum(l) / (100.0 * B))
    for i in range(n_scales):
        ts = t_scales[i]
        m = ~jnp.isnan(ts)
        tv2 = jnp.where(m, ts, 1.0)
        l = jnp.abs(x_scales[:, :, i] - jnp.log(tv2)) * m
        out.append(jnp.sum(l) / (100.0 * B))
    return jnp.stack(out)


if __name__ == "__main__":
    # N = B*C = 18 -> block_rows = 16: exercises the multi-stripe fori_loop path,
    # a two-step grid, and the ragged last block (rows 16..17 valid, rest masked).
    B, C, H, W = 2, 9, 16, 16
    nv, ns = 2, 1  # CAF-style head: n_vectors=2, n_scales=1

    key = jax.random.PRNGKey(0)
    keys = jax.random.split(key, 10)

    # network outputs
    x_conf = jax.random.normal(keys[0], (B, C, 1, H, W), jnp.float32)
    x_regs = jax.random.normal(keys[1], (B, C, nv, 2, H, W), jnp.float32)
    x_logbs = jax.random.normal(keys[2], (B, C, nv, H, W), jnp.float32)
    x_scales = jax.random.normal(keys[3], (B, C, ns, H, W), jnp.float32)

    # targets (NaN marks unannotated locations, as in openpifpaf encoders)
    conf_nan = jax.random.uniform(keys[4], (B, C, H, W)) < 0.3
    t_conf = jnp.where(jax.random.uniform(keys[5], (B, C, H, W)) < 0.2, 1.0, 0.0)
    t_conf = jnp.where(conf_nan, jnp.nan, t_conf).astype(jnp.float32)

    t_regs = []
    for i in range(nv):
        vals = jax.random.normal(jax.random.fold_in(keys[6], i),
                                 (B, C, 2, H, W), jnp.float32) * 2.0
        nanm = jax.random.uniform(jax.random.fold_in(keys[7], i),
                                  (B, C, 1, H, W)) < 0.6
        t_regs.append(jnp.where(nanm, jnp.nan, vals))

    t_scales = []
    for i in range(ns):
        vals = jnp.exp(jax.random.normal(jax.random.fold_in(keys[8], i),
                                         (B, C, H, W), jnp.float32) * 0.5) + 0.1
        nanm = jax.random.uniform(jax.random.fold_in(keys[9], i),
                                  (B, C, H, W)) < 0.6
        t_scales.append(jnp.where(nanm, jnp.nan, vals))

    losses = composite_loss(x_conf, x_regs, x_logbs, x_scales,
                            t_conf, t_regs, t_scales,
                            n_vectors=nv, n_scales=ns)
    losses = jax.block_until_ready(losses)

    ref = reference(x_conf, x_regs, x_logbs, x_scales,
                    t_conf, t_regs, t_scales,
                    n_vectors=nv, n_scales=ns)
    assert jnp.allclose(losses, ref, rtol=1e-4, atol=1e-5), (losses, ref)

    print("KERNEL_OK")
</pallas_src>

<mosaic_0001>
module attributes {stable_mosaic.version = 11 : i64} {
  func.func @_composite_loss_kernel(%arg0: i32, %arg1: memref<16x256xf32, #tpu.memory_space<vmem>>, %arg2: memref<16x256xf32, #tpu.memory_space<vmem>>, %arg3: memref<16x1024xf32, #tpu.memory_space<vmem>>, %arg4: memref<16x512xf32, #tpu.memory_space<vmem>>, %arg5: memref<16x256xf32, #tpu.memory_space<vmem>>, %arg6: memref<16x512xf32, #tpu.memory_space<vmem>>, %arg7: memref<16x512xf32, #tpu.memory_space<vmem>>, %arg8: memref<16x256xf32, #tpu.memory_space<vmem>>, %arg9: memref<4xf32, #tpu.memory_space<smem>>, %arg10: memref<4x8x256xf32, #tpu.memory_space<vmem>>) attributes {dimension_semantics = [#tpu.dimension_semantics<arbitrary>], iteration_bounds = array<i64: 2>, scalar_prefetch = 0 : i64, scratch_operands = 1 : i64, tpu.core_type = #tpu.core_type<tc>, window_params = [{transform_indices = @transform_0, window_bounds = array<i64: 16, 256>}, {transform_indices = @transform_1, window_bounds = array<i64: 16, 256>}, {transform_indices = @transform_2, window_bounds = array<i64: 16, 1024>}, {transform_indices = @transform_3, window_bounds = array<i64: 16, 512>}, {transform_indices = @transform_4, window_bounds = array<i64: 16, 256>}, {transform_indices = @transform_5, window_bounds = array<i64: 16, 512>}, {transform_indices = @transform_6, window_bounds = array<i64: 16, 512>}, {transform_indices = @transform_7, window_bounds = array<i64: 16, 256>}, {transform_indices = @transform_8, window_bounds = array<i64: 4>}]} {
    %c0_i32 = arith.constant 0 : i32
    %0 = arith.cmpi eq, %arg0, %c0_i32 : i32
    %1 = arith.extui %0 : i1 to i32
    %c0_i32_0 = arith.constant 0 : i32
    %2 = arith.cmpi ne, %1, %c0_i32_0 : i32
    scf.if %2 {
      %cst = arith.constant 0.000000e+00 : f32
      %7 = vector.broadcast %cst : f32 to vector<4x8x256xf32>
      %c0 = arith.constant 0 : index
      %c0_5 = arith.constant 0 : index
      %c0_6 = arith.constant 0 : index
      %8 = vector.load %arg10[%c0, %c0_5, %c0_6] : memref<4x8x256xf32, #tpu.memory_space<vmem>>, vector<4x8x256xf32>
      tpu.vector_store %arg10[%c0, %c0_5, %c0_6], %7 {strides = array<i32>} : memref<4x8x256xf32, #tpu.memory_space<vmem>>, vector<4x8x256xf32>,
    } else {
    }
    %c0_i32_1 = arith.constant 0 : i32
    %c2_i32 = arith.constant 2 : i32
    %3 = arith.addi %c0_i32_1, %c2_i32 : i32
    %c1_i32 = arith.constant 1 : i32
    scf.for %arg11 = %c0_i32_1 to %3 step %c1_i32  : i32 {
      %c8_i32 = arith.constant 8 : i32
      %7 = arith.muli %arg11, %c8_i32 : i32
      %8 = tpu.assume_multiple %7, 8 : i32
      %c16_i32 = arith.constant 16 : i32
      %9 = arith.muli %arg0, %c16_i32 : i32
      %10 = arith.addi %9, %8 : i32
      %11 = tpu.iota {dimensions = array<i32: 0>} : vector<8x256xi32>
      %12 = vector.broadcast %10 : i32 to vector<8x256xi32>
      %13 = arith.addi %11, %12 : vector<8x256xi32>
      %c18_i32 = arith.constant 18 : i32
      %14 = vector.broadcast %c18_i32 : i32 to vector<8x256xi32>
      %15 = arith.cmpi slt, %13, %14 : vector<8x256xi32>
      %16 = arith.index_cast %8 : i32 to index
      %c0 = arith.constant 0 : index
      %17 = vector.load %arg1[%16, %c0] : memref<16x256xf32, #tpu.memory_space<vmem>>, vector<8x256xf32>
      %18 = arith.index_cast %8 : i32 to index
      %c0_5 = arith.constant 0 : index
      %19 = vector.load %arg2[%18, %c0_5] : memref<16x256xf32, #tpu.memory_space<vmem>>, vector<8x256xf32>
      %20 = arith.cmpf one, %19, %19 : vector<8x256xf32>
      %cst = arith.constant dense<true> : vector<8x256xi1>
      %21 = arith.xori %20, %cst : vector<8x256xi1>
      %22 = arith.extui %21 : vector<8x256xi1> to vector<8x256xi32>
      %23 = arith.sitofp %22 : vector<8x256xi32> to vector<8x256xf32>
      %cst_6 = arith.constant 0.000000e+00 : f32
      %24 = vector.broadcast %cst_6 : f32 to vector<8x256xf32>
      %25 = arith.select %21, %19, %24 : vector<8x256xi1>, vector<8x256xf32>
      %cst_7 = arith.constant 1.000000e+00 : f32
      %26 = vector.broadcast %cst_7 : f32 to vector<8x256xf32>
      %27 = arith.cmpf oeq, %25, %26 : vector<8x256xf32>
      %cst_8 = arith.constant 0.000000e+00 : f32
      %28 = vector.broadcast %cst_8 : f32 to vector<8x256xf32>
      %29 = arith.subf %28, %17 : vector<8x256xf32>
      %30 = arith.select %27, %17, %29 : vector<8x256xi1>, vector<8x256xf32>
      %31 = math.absf %30 : vector<8x256xf32>
      %cst_9 = arith.constant 0.000000e+00 : f32
      %32 = vector.broadcast %cst_9 : f32 to vector<8x256xf32>
      %33 = arith.subf %32, %31 : vector<8x256xf32>
      %34 = math.exp %33 : vector<8x256xf32>
      %cst_10 = arith.constant 0.000000e+00 : f32
      %35 = vector.broadcast %cst_10 : f32 to vector<8x256xf32>
      %36 = arith.subf %35, %30 : vector<8x256xf32>
      %cst_11 = arith.constant 0.000000e+00 : f32
      %37 = vector.broadcast %cst_11 : f32 to vector<8x256xf32>
      %38 = arith.maximumf %36, %37 : vector<8x256xf32>
      %39 = math.log1p %34 : vector<8x256xf32>
      %40 = arith.addf %38, %39 : vector<8x256xf32>
      %cst_12 = arith.constant 1.000000e+00 : f32
      %41 = vector.broadcast %cst_12 : f32 to vector<8x256xf32>
      %42 = arith.addf %41, %34 : vector<8x256xf32>
      %43 = tpu.reciprocal %42 {approx = true} : vector<8x256xf32> -> vector<8x256xf32>
      %44 = arith.mulf %42, %43 : vector<8x256xf32>
      %cst_13 = arith.constant 2.000000e+00 : f32
      %45 = vector.broadcast %cst_13 : f32 to vector<8x256xf32>
      %46 = arith.subf %45, %44 : vector<8x256xf32>
      %47 = arith.mulf %43, %46 : vector<8x256xf32>
      %cst_14 = arith.constant 0.000000e+00 : f32
      %48 = vector.broadcast %cst_14 : f32 to vector<8x256xf32>
      %49 = arith.cmpf oge, %30, %48 : vector<8x256xf32>
      %50 = arith.mulf %34, %47 : vector<8x256xf32>
      %51 = arith.select %49, %50, %47 : vector<8x256xi1>, vector<8x256xf32>
      %c0_15 = arith.constant 0 : index
      %c0_16 = arith.constant 0 : index
      %c0_17 = arith.constant 0 : index
      %52 = vector.load %arg10[%c0_15, %c0_16, %c0_17] : memref<4x8x256xf32, #tpu.memory_space<vmem>>, vector<1x8x256xf32>
      %53 = vector.shape_cast %52 : vector<1x8x256xf32> to vector<8x256xf32>
      %54 = arith.mulf %40, %51 : vector<8x256xf32>
      %55 = arith.mulf %54, %23 : vector<8x256xf32>
      %cst_18 = arith.constant 0.000000e+00 : f32
      %56 = vector.broadcast %cst_18 : f32 to vector<8x256xf32>
      %57 = arith.select %15, %55, %56 : vector<8x256xi1>, vector<8x256xf32>
      %58 = arith.addf %53, %57 : vector<8x256xf32>
      %c0_19 = arith.constant 0 : index
      %c0_20 = arith.constant 0 : index
      %c0_21 = arith.constant 0 : index
      %59 = vector.load %arg10[%c0_19, %c0_20, %c0_21] : memref<4x8x256xf32, #tpu.memory_space<vmem>>, vector<1x8x256xf32>
      %60 = vector.shape_cast %59 : vector<1x8x256xf32> to vector<8x256xf32>
      %61 = vector.shape_cast %58 : vector<8x256xf32> to vector<1x8x256xf32>
      tpu.vector_store %arg10[%c0_19, %c0_20, %c0_21], %61 {strides = array<i32>} : memref<4x8x256xf32, #tpu.memory_space<vmem>>, vector<1x8x256xf32>,
      %62 = arith.index_cast %8 : i32 to index
      %c0_22 = arith.constant 0 : index
      %63 = vector.load %arg3[%62, %c0_22] : memref<16x1024xf32, #tpu.memory_space<vmem>>, vector<8x256xf32>
      %64 = arith.index_cast %8 : i32 to index
      %c256 = arith.constant 256 : index
      %65 = vector.load %arg3[%64, %c256] : memref<16x1024xf32, #tpu.memory_space<vmem>>, vector<8x256xf32>
      %66 = arith.index_cast %8 : i32 to index
      %c0_23 = arith.constant 0 : index
      %67 = vector.load %arg4[%66, %c0_23] : memref<16x512xf32, #tpu.memory_space<vmem>>, vector<8x256xf32>
      %68 = arith.index_cast %8 : i32 to index
      %c0_24 = arith.constant 0 : index
      %69 = vector.load %arg6[%68, %c0_24] : memref<16x512xf32, #tpu.memory_space<vmem>>, vector<8x256xf32>
      %70 = arith.index_cast %8 : i32 to index
      %c256_25 = arith.constant 256 : index
      %71 = vector.load %arg6[%70, %c256_25] : memref<16x512xf32, #tpu.memory_space<vmem>>, vector<8x256xf32>
      %72 = arith.cmpf one, %69, %69 : vector<8x256xf32>
      %cst_26 = arith.constant dense<true> : vector<8x256xi1>
      %73 = arith.xori %72, %cst_26 : vector<8x256xi1>
      %74 = arith.extui %73 : vector<8x256xi1> to vector<8x256xi32>
      %75 = arith.sitofp %74 : vector<8x256xi32> to vector<8x256xf32>
      %cst_27 = arith.constant 0.000000e+00 : f32
      %76 = vector.broadcast %cst_27 : f32 to vector<8x256xf32>
      %77 = arith.select %73, %69, %76 : vector<8x256xi1>, vector<8x256xf32>
      %cst_28 = arith.constant 0.000000e+00 : f32
      %78 = vector.broadcast %cst_28 : f32 to vector<8x256xf32>
      %79 = arith.select %73, %71, %78 : vector<8x256xi1>, vector<8x256xf32>
      %80 = arith.subf %63, %77 : vector<8x256xf32>
      %81 = arith.subf %65, %79 : vector<8x256xf32>
      %82 = arith.mulf %80, %80 : vector<8x256xf32>
      %83 = arith.mulf %81, %81 : vector<8x256xf32>
      %84 = arith.addf %82, %83 : vector<8x256xf32>
      %85 = math.sqrt %84 : vector<8x256xf32>
      %cst_29 = arith.constant 0.333333343 : f32
      %86 = vector.broadcast %cst_29 : f32 to vector<8x256xf32>
      %87 = arith.mulf %67, %86 : vector<8x256xf32>
      %88 = math.tanh %87 : vector<8x256xf32>
      %cst_30 = arith.constant 3.000000e+00 : f32
      %89 = vector.broadcast %cst_30 : f32 to vector<8x256xf32>
      %90 = arith.mulf %89, %88 : vector<8x256xf32>
      %c1 = arith.constant 1 : index
      %c0_31 = arith.constant 0 : index
      %c0_32 = arith.constant 0 : index
      %91 = vector.load %arg10[%c1, %c0_31, %c0_32] : memref<4x8x256xf32, #tpu.memory_space<vmem>>, vector<1x8x256xf32>
      %92 = vector.shape_cast %91 : vector<1x8x256xf32> to vector<8x256xf32>
      %cst_33 = arith.constant 6.940000e-01 : f32
      %93 = vector.broadcast %cst_33 : f32 to vector<8x256xf32>
      %94 = arith.addf %93, %90 : vector<8x256xf32>
      %cst_34 = arith.constant 0.000000e+00 : f32
      %95 = vector.broadcast %cst_34 : f32 to vector<8x256xf32>
      %96 = arith.subf %95, %90 : vector<8x256xf32>
      %97 = math.exp %96 : vector<8x256xf32>
      %98 = arith.mulf %85, %97 : vector<8x256xf32>
      %99 = arith.addf %94, %98 : vector<8x256xf32>
      %100 = arith.mulf %99, %75 : vector<8x256xf32>
      %cst_35 = arith.constant 0.000000e+00 : f32
      %101 = vector.broadcast %cst_35 : f32 to vector<8x256xf32>
      %102 = arith.select %15, %100, %101 : vector<8x256xi1>, vector<8x256xf32>
      %103 = arith.addf %92, %102 : vector<8x256xf32>
      %c1_36 = arith.constant 1 : index
      %c0_37 = arith.constant 0 : index
      %c0_38 = arith.constant 0 : index
      %104 = vector.load %arg10[%c1_36, %c0_37, %c0_38] : memref<4x8x256xf32, #tpu.memory_space<vmem>>, vector<1x8x256xf32>
      %105 = vector.shape_cast %104 : vector<1x8x256xf32> to vector<8x256xf32>
      %106 = vector.shape_cast %103 : vector<8x256xf32> to vector<1x8x256xf32>
      tpu.vector_store %arg10[%c1_36, %c0_37, %c0_38], %106 {strides = array<i32>} : memref<4x8x256xf32, #tpu.memory_space<vmem>>, vector<1x8x256xf32>,
      %107 = arith.index_cast %8 : i32 to index
      %c512 = arith.constant 512 : index
      %108 = vector.load %arg3[%107, %c512] : memref<16x1024xf32, #tpu.memory_space<vmem>>, vector<8x256xf32>
      %109 = arith.index_cast %8 : i32 to index
      %c768 = arith.constant 768 : index
      %110 = vector.load %arg3[%109, %c768] : memref<16x1024xf32, #tpu.memory_space<vmem>>, vector<8x256xf32>
      %111 = arith.index_cast %8 : i32 to index
      %c256_39 = arith.constant 256 : index
      %112 = vector.load %arg4[%111, %c256_39] : memref<16x512xf32, #tpu.memory_space<vmem>>, vector<8x256xf32>
      %113 = arith.index_cast %8 : i32 to index
      %c0_40 = arith.constant 0 : index
      %114 = vector.load %arg7[%113, %c0_40] : memref<16x512xf32, #tpu.memory_space<vmem>>, vector<8x256xf32>
      %115 = arith.index_cast %8 : i32 to index
      %c256_41 = arith.constant 256 : index
      %116 = vector.load %arg7[%115, %c256_41] : memref<16x512xf32, #tpu.memory_space<vmem>>, vector<8x256xf32>
      %117 = arith.cmpf one, %114, %114 : vector<8x256xf32>
      %cst_42 = arith.constant dense<true> : vector<8x256xi1>
      %118 = arith.xori %117, %cst_42 : vector<8x256xi1>
      %119 = arith.extui %118 : vector<8x256xi1> to vector<8x256xi32>
      %120 = arith.sitofp %119 : vector<8x256xi32> to vector<8x256xf32>
      %cst_43 = arith.constant 0.000000e+00 : f32
      %121 = vector.broadcast %cst_43 : f32 to vector<8x256xf32>
      %122 = arith.select %118, %114, %121 : vector<8x256xi1>, vector<8x256xf32>
      %cst_44 = arith.constant 0.000000e+00 : f32
      %123 = vector.broadcast %cst_44 : f32 to vector<8x256xf32>
      %124 = arith.select %118, %116, %123 : vector<8x256xi1>, vector<8x256xf32>
      %125 = arith.subf %108, %122 : vector<8x256xf32>
      %126 = arith.subf %110, %124 : vector<8x256xf32>
      %127 = arith.mulf %125, %125 : vector<8x256xf32>
      %128 = arith.mulf %126, %126 : vector<8x256xf32>
      %129 = arith.addf %127, %128 : vector<8x256xf32>
      %130 = math.sqrt %129 : vector<8x256xf32>
      %cst_45 = arith.constant 0.333333343 : f32
      %131 = vector.broadcast %cst_45 : f32 to vector<8x256xf32>
      %132 = arith.mulf %112, %131 : vector<8x256xf32>
      %133 = math.tanh %132 : vector<8x256xf32>
      %cst_46 = arith.constant 3.000000e+00 : f32
      %134 = vector.broadcast %cst_46 : f32 to vector<8x256xf32>
      %135 = arith.mulf %134, %133 : vector<8x256xf32>
      %c2 = arith.constant 2 : index
      %c0_47 = arith.constant 0 : index
      %c0_48 = arith.constant 0 : index
      %136 = vector.load %arg10[%c2, %c0_47, %c0_48] : memref<4x8x256xf32, #tpu.memory_space<vmem>>, vector<1x8x256xf32>
      %137 = vector.shape_cast %136 : vector<1x8x256xf32> to vector<8x256xf32>
      %cst_49 = arith.constant 6.940000e-01 : f32
      %138 = vector.broadcast %cst_49 : f32 to vector<8x256xf32>
      %139 = arith.addf %138, %135 : vector<8x256xf32>
      %cst_50 = arith.constant 0.000000e+00 : f32
      %140 = vector.broadcast %cst_50 : f32 to vector<8x256xf32>
      %141 = arith.subf %140, %135 : vector<8x256xf32>
      %142 = math.exp %141 : vector<8x256xf32>
      %143 = arith.mulf %130, %142 : vector<8x256xf32>
      %144 = arith.addf %139, %143 : vector<8x256xf32>
      %145 = arith.mulf %144, %120 : vector<8x256xf32>
      %cst_51 = arith.constant 0.000000e+00 : f32
      %146 = vector.broadcast %cst_51 : f32 to vector<8x256xf32>
      %147 = arith.select %15, %145, %146 : vector<8x256xi1>, vector<8x256xf32>
      %148 = arith.addf %137, %147 : vector<8x256xf32>
      %c2_52 = arith.constant 2 : index
      %c0_53 = arith.constant 0 : index
      %c0_54 = arith.constant 0 : index
      %149 = vector.load %arg10[%c2_52, %c0_53, %c0_54] : memref<4x8x256xf32, #tpu.memory_space<vmem>>, vector<1x8x256xf32>
      %150 = vector.shape_cast %149 : vector<1x8x256xf32> to vector<8x256xf32>
      %151 = vector.shape_cast %148 : vector<8x256xf32> to vector<1x8x256xf32>
      tpu.vector_store %arg10[%c2_52, %c0_53, %c0_54], %151 {strides = array<i32>} : memref<4x8x256xf32, #tpu.memory_space<vmem>>, vector<1x8x256xf32>,
      %152 = arith.index_cast %8 : i32 to index
      %c0_55 = arith.constant 0 : index
      %153 = vector.load %arg5[%152, %c0_55] : memref<16x256xf32, #tpu.memory_space<vmem>>, vector<8x256xf32>
      %154 = arith.index_cast %8 : i32 to index
      %c0_56 = arith.constant 0 : index
      %155 = vector.load %arg8[%154, %c0_56] : memref<16x256xf32, #tpu.memory_space<vmem>>, vector<8x256xf32>
      %156 = arith.cmpf one, %155, %155 : vector<8x256xf32>
      %cst_57 = arith.constant dense<true> : vector<8x256xi1>
      %157 = arith.xori %156, %cst_57 : vector<8x256xi1>
      %158 = arith.extui %157 : vector<8x256xi1> to vector<8x256xi32>
      %159 = arith.sitofp %158 : vector<8x256xi32> to vector<8x256xf32>
      %cst_58 = arith.constant 1.000000e+00 : f32
      %160 = vector.broadcast %cst_58 : f32 to vector<8x256xf32>
      %161 = arith.select %157, %155, %160 : vector<8x256xi1>, vector<8x256xf32>
      %c3 = arith.constant 3 : index
      %c0_59 = arith.constant 0 : index
      %c0_60 = arith.constant 0 : index
      %162 = vector.load %arg10[%c3, %c0_59, %c0_60] : memref<4x8x256xf32, #tpu.memory_space<vmem>>, vector<1x8x256xf32>
      %163 = vector.shape_cast %162 : vector<1x8x256xf32> to vector<8x256xf32>
      %164 = math.log %161 : vector<8x256xf32>
      %165 = arith.subf %153, %164 : vector<8x256xf32>
      %166 = math.absf %165 : vector<8x256xf32>
      %167 = arith.mulf %166, %159 : vector<8x256xf32>
      %cst_61 = arith.constant 0.000000e+00 : f32
      %168 = vector.broadcast %cst_61 : f32 to vector<8x256xf32>
      %169 = arith.select %15, %167, %168 : vector<8x256xi1>, vector<8x256xf32>
      %170 = arith.addf %163, %169 : vector<8x256xf32>
      %c3_62 = arith.constant 3 : index
      %c0_63 = arith.constant 0 : index
      %c0_64 = arith.constant 0 : index
      %171 = vector.load %arg10[%c3_62, %c0_63, %c0_64] : memref<4x8x256xf32, #tpu.memory_space<vmem>>, vector<1x8x256xf32>
      %172 = vector.shape_cast %171 : vector<1x8x256xf32> to vector<8x256xf32>
      %173 = vector.shape_cast %170 : vector<8x256xf32> to vector<1x8x256xf32>
      tpu.vector_store %arg10[%c3_62, %c0_63, %c0_64], %173 {strides = array<i32>} : memref<4x8x256xf32, #tpu.memory_space<vmem>>, vector<1x8x256xf32>,
    }
    %c2_i32_2 = arith.constant 2 : i32
    %c1_i32_3 = arith.constant 1 : i32
    %4 = arith.cmpi eq, %arg0, %c1_i32_3 : i32
    %5 = arith.extui %4 : i1 to i32
    %c0_i32_4 = arith.constant 0 : i32
    %6 = arith.cmpi ne, %5, %c0_i32_4 : i32
    scf.if %6 {
      %c0 = arith.constant 0 : index
      %c0_5 = arith.constant 0 : index
      %c0_6 = arith.constant 0 : index
      %7 = vector.load %arg10[%c0, %c0_5, %c0_6] : memref<4x8x256xf32, #tpu.memory_space<vmem>>, vector<1x8x256xf32>
      %8 = vector.shape_cast %7 : vector<1x8x256xf32> to vector<8x256xf32>
      %9 = vector.shape_cast %8 : vector<8x256xf32> to vector<1x8x256xf32>
      %cst = arith.constant dense<0.000000e+00> : vector<1xf32>
      %10 = vector.multi_reduction <add>, %9, %cst [1, 2] : vector<1x8x256xf32> to vector<1xf32>
      %11 = vector.shape_cast %10 : vector<1xf32> to vector<1x1x1xf32>
      %12 = vector.extract %11[0, 0, 0] : f32 from vector<1x1x1xf32>
      %cst_7 = arith.constant 5.000000e-04 : f32
      %13 = arith.mulf %12, %cst_7 : f32
      %c0_8 = arith.constant 0 : index
      %14 = memref.load %arg9[%c0_8] : memref<4xf32, #tpu.memory_space<smem>>
      memref.store %13, %arg9[%c0_8] : memref<4xf32, #tpu.memory_space<smem>>
      %c1 = arith.constant 1 : index
      %c0_9 = arith.constant 0 : index
      %c0_10 = arith.constant 0 : index
      %15 = vector.load %arg10[%c1, %c0_9, %c0_10] : memref<4x8x256xf32, #tpu.memory_space<vmem>>, vector<1x8x256xf32>
      %16 = vector.shape_cast %15 : vector<1x8x256xf32> to vector<8x256xf32>
      %17 = vector.shape_cast %16 : vector<8x256xf32> to vector<1x8x256xf32>
      %cst_11 = arith.constant dense<0.000000e+00> : vector<1xf32>
      %18 = vector.multi_reduction <add>, %17, %cst_11 [1, 2] : vector<1x8x256xf32> to vector<1xf32>
      %19 = vector.shape_cast %18 : vector<1xf32> to vector<1x1x1xf32>
      %20 = vector.extract %19[0, 0, 0] : f32 from vector<1x1x1xf32>
      %cst_12 = arith.constant 5.000000e-04 : f32
      %21 = arith.mulf %20, %cst_12 : f32
      %c1_13 = arith.constant 1 : index
      %22 = memref.load %arg9[%c1_13] : memref<4xf32, #tpu.memory_space<smem>>
      memref.store %21, %arg9[%c1_13] : memref<4xf32, #tpu.memory_space<smem>>
      %c2 = arith.constant 2 : index
      %c0_14 = arith.constant 0 : index
      %c0_15 = arith.constant 0 : index
      %23 = vector.load %arg10[%c2, %c0_14, %c0_15] : memref<4x8x256xf32, #tpu.memory_space<vmem>>, vector<1x8x256xf32>
      %24 = vector.shape_cast %23 : vector<1x8x256xf32> to vector<8x256xf32>
      %25 = vector.shape_cast %24 : vector<8x256xf32> to vector<1x8x256xf32>
      %cst_16 = arith.constant dense<0.000000e+00> : vector<1xf32>
      %26 = vector.multi_reduction <add>, %25, %cst_16 [1, 2] : vector<1x8x256xf32> to vector<1xf32>
      %27 = vector.shape_cast %26 : vector<1xf32> to vector<1x1x1xf32>
      %28 = vector.extract %27[0, 0, 0] : f32 from vector<1x1x1xf32>
      %cst_17 = arith.constant 5.000000e-04 : f32
      %29 = arith.mulf %28, %cst_17 : f32
      %c2_18 = arith.constant 2 : index
      %30 = memref.load %arg9[%c2_18] : memref<4xf32, #tpu.memory_space<smem>>
      memref.store %29, %arg9[%c2_18] : memref<4xf32, #tpu.memory_space<smem>>
      %c3 = arith.constant 3 : index
      %c0_19 = arith.constant 0 : index
      %c0_20 = arith.constant 0 : index
      %31 = vector.load %arg10[%c3, %c0_19, %c0_20] : memref<4x8x256xf32, #tpu.memory_space<vmem>>, vector<1x8x256xf32>
      %32 = vector.shape_cast %31 : vector<1x8x256xf32> to vector<8x256xf32>
      %33 = vector.shape_cast %32 : vector<8x256xf32> to vector<1x8x256xf32>
      %cst_21 = arith.constant dense<0.000000e+00> : vector<1xf32>
      %34 = vector.multi_reduction <add>, %33, %cst_21 [1, 2] : vector<1x8x256xf32> to vector<1xf32>
      %35 = vector.shape_cast %34 : vector<1xf32> to vector<1x1x1xf32>
      %36 = vector.extract %35[0, 0, 0] : f32 from vector<1x1x1xf32>
      %cst_22 = arith.constant 5.000000e-03 : f32
      %37 = arith.mulf %36, %cst_22 : f32
      %c3_23 = arith.constant 3 : index
      %38 = memref.load %arg9[%c3_23] : memref<4xf32, #tpu.memory_space<smem>>
      memref.store %37, %arg9[%c3_23] : memref<4xf32, #tpu.memory_space<smem>>
    } else {
    }
    return
  }
  func.func @transform_0(%arg0: i32) -> (i32, i32) {
    %c0_i32 = arith.constant 0 : i32
    %c0_i32_0 = arith.constant 0 : i32
    return %arg0, %c0_i32 : i32, i32
  }
  func.func @transform_1(%arg0: i32) -> (i32, i32) {
    %c0_i32 = arith.constant 0 : i32
    %c0_i32_0 = arith.constant 0 : i32
    return %arg0, %c0_i32 : i32, i32
  }
  func.func @transform_2(%arg0: i32) -> (i32, i32) {
    %c0_i32 = arith.constant 0 : i32
    %c0_i32_0 = arith.constant 0 : i32
    return %arg0, %c0_i32 : i32, i32
  }
  func.func @transform_3(%arg0: i32) -> (i32, i32) {
    %c0_i32 = arith.constant 0 : i32
    %c0_i32_0 = arith.constant 0 : i32
    return %arg0, %c0_i32 : i32, i32
  }
  func.func @transform_4(%arg0: i32) -> (i32, i32) {
    %c0_i32 = arith.constant 0 : i32
    %c0_i32_0 = arith.constant 0 : i32
    return %arg0, %c0_i32 : i32, i32
  }
  func.func @transform_5(%arg0: i32) -> (i32, i32) {
    %c0_i32 = arith.constant 0 : i32
    %c0_i32_0 = arith.constant 0 : i32
    return %arg0, %c0_i32 : i32, i32
  }
  func.func @transform_6(%arg0: i32) -> (i32, i32) {
    %c0_i32 = arith.constant 0 : i32
    %c0_i32_0 = arith.constant 0 : i32
    return %arg0, %c0_i32 : i32, i32
  }
  func.func @transform_7(%arg0: i32) -> (i32, i32) {
    %c0_i32 = arith.constant 0 : i32
    %c0_i32_0 = arith.constant 0 : i32
    return %arg0, %c0_i32 : i32, i32
  }
  func.func @transform_8(%arg0: i32) -> i32 {
    %c0_i32 = arith.constant 0 : i32
    %c0_i32_0 = arith.constant 0 : i32
    return %c0_i32 : i32
  }
}

</mosaic_0001>

<llo_original>
// kernel: tpu_custom_call.1
$region0: #{tpu_custom_call.1}
  #allocation0 [shape = 'u32[]', space=smem, size = 0x4, offset = 0x4, fixed_abs, tag = 'smem constant byte address 0x4 - core index']
  #allocation1 [shape = 'u32[144,128]{1,0:T(1,128)}', space=vmem, size = 0x12000, scoped, tag = 'internal scratch']
  #allocation2 [shape = 'f32[4,8,256]{2,1,0:T(8,128)}', space=vmem, size = 0x8000, scoped, tag = 'scratch operand']
  %s0 = inlined_call_operand.hbm [shape: f32[18,256], index: 0, kind: input, shape index: {}]
  %s1 = inlined_call_operand.hbm [shape: f32[18,256], index: 1, kind: input, shape index: {}]
  %s2 = inlined_call_operand.hbm [shape: f32[18,1024], index: 2, kind: input, shape index: {}]
  %s3 = inlined_call_operand.hbm [shape: f32[18,512], index: 3, kind: input, shape index: {}]
  %s4 = inlined_call_operand.hbm [shape: f32[18,256], index: 4, kind: input, shape index: {}]
  %s5 = inlined_call_operand.hbm [shape: f32[18,512], index: 5, kind: input, shape index: {}]
  %s6 = inlined_call_operand.hbm [shape: f32[18,512], index: 6, kind: input, shape index: {}]
  %s7 = inlined_call_operand.hbm [shape: f32[18,256], index: 7, kind: input, shape index: {}]
  %s8 = inlined_call_operand.hbm [shape: f32[4], index: 8, kind: output, shape index: {}]
  %s9 = sld [smem:[#allocation0]]
  $region112: #{tpu_custom_call.1} parent=0
    _
  %s11 = ssub.s32 1, %s9
  %s12 = scalar_select 0, %s11, %s9
  $region1: #{tpu_custom_call.1} parent=0
    #allocation3 [shape = 'u8[32768]{0}', space=vmem, size = 0x8000, scoped, tag = 'input window, operand 0']
    #allocation4 [shape = 's32[2]{0}', space=sflag, size = 0x8, scoped, tag = 'scoped memory for tpu_custom_call.1']
    #allocation5 [shape = 's32[2]{0}', space=sflag, size = 0x8, scoped, tag = 'scoped memory for tpu_custom_call.1']
    #allocation6 [shape = 'u8[32768]{0}', space=vmem, size = 0x8000, scoped, tag = 'input window, operand 1']
    #allocation7 [shape = 's32[2]{0}', space=sflag, size = 0x8, scoped, tag = 'scoped memory for tpu_custom_call.1']
    #allocation8 [shape = 'u8[131072]{0}', space=vmem, size = 0x20000, scoped, tag = 'input window, operand 2']
    #allocation9 [shape = 'u8[65536]{0}', space=vmem, size = 0x10000, scoped, tag = 'input window, operand 3']
    #allocation10 [shape = 's32[2]{0}', space=sflag, size = 0x8, scoped, tag = 'scoped memory for tpu_custom_call.1']
    #allocation11 [shape = 'u8[32768]{0}', space=vmem, size = 0x8000, scoped, tag = 'input window, operand 4']
    #allocation12 [shape = 'u8[65536]{0}', space=vmem, size = 0x10000, scoped, tag = 'input window, operand 5']
    #allocation13 [shape = 's32[2]{0}', space=sflag, size = 0x8, scoped, tag = 'scoped memory for tpu_custom_call.1']
    #allocation14 [shape = 'u8[65536]{0}', space=vmem, size = 0x10000, scoped, tag = 'input window, operand 6']
    #allocation15 [shape = 'u8[32768]{0}', space=vmem, size = 0x8000, scoped, tag = 'input window, operand 7']
    #allocation16 [shape = 's32[2]{0}', space=sflag, size = 0x8, scoped, tag = 'scoped memory for tpu_custom_call.1']
    #allocation17 [shape = 'u8[512]{0}', space=smem, size = 0x200, scoped, tag = 'output window, operand 0, single buffered']
    %13 = vsyncpa [#allocation4], 0
    %s14 = scalar_lea.sflag [#allocation4], 1
    %15 = vsyncpa %s14, 0
    %16 = vsyncpa [#allocation7], 0
    %s17 = scalar_lea.sflag [#allocation7], 1
    %18 = vsyncpa %s17, 0
    %19 = vsyncpa [#allocation10], 0
    %s20 = scalar_lea.sflag [#allocation10], 1
    %21 = vsyncpa %s20, 0
    %22 = vsyncpa [#allocation13], 0
    %s23 = scalar_lea.sflag [#allocation13], 1
    %24 = vsyncpa %s23, 0
    %25 = vsyncpa [#allocation16], 0
    %s26 = scalar_lea.sflag [#allocation16], 1
    %27 = vsyncpa %s26, 0
    %28 = vsyncpa [#allocation5], 0
    loop: start=0, step=1, limit=4
    $region2: #{tpu_custom_call.1} parent=1 // loop_pre_header
      _
    $region3: #{tpu_custom_call.1} parent=1 // loop_header
      %s30 = sphi 0, %s34
      %p31 = scmp.ge.s32.totalorder %s30, 4
      %s40 = sphi 0, %s42
      %s43 = sphi 0, %s40
      %s44 = sphi 0, %s43
      %s60 = sphi 0, %s44
      %s66 = sphi 0, %s68
      %s69 = sphi 0, %s66
      %s70 = sphi 0, %s69
      %s86 = sphi 0, %s70
      %s92 = sphi 0, %s94
      %s95 = sphi 0, %s92
      %s96 = sphi 0, %s95
      %s112 = sphi 0, %s96
      %s118 = sphi 0, %s120
      %s121 = sphi 0, %s118
      %s122 = sphi 0, %s121
      %s138 = sphi 0, %s122
      %s144 = sphi 0, %s146
      %s147 = sphi 0, %s144
      %s148 = sphi 0, %s147
      %s164 = sphi 0, %s148
      %s170 = sphi 0, %s172
      %s173 = sphi 0, %s170
      %s174 = sphi 0, %s173
      %s190 = sphi 0, %s174
      %s196 = sphi 0, %s198
      %s199 = sphi 0, %s196
      %s200 = sphi 0, %s199
      %s216 = sphi 0, %s200
      %s222 = sphi 0, %s224
      %s225 = sphi 0, %s222
      %s226 = sphi 0, %s225
      %s242 = sphi 0, %s226
      %s246 = sphi 0, %s246
      %s248 = sphi 0, %s246
      %s249 = sphi 0, %s248
      %s263 = sphi 0, %s249
    $region4: #{tpu_custom_call.1} parent=1 // loop_header_branch
      %33 = sbr.rel (%p31) target = $region8
    $region5: #{tpu_custom_call.1} parent=1 // loop_body
      %s35 = ssub.s32 %s30, 1
      %s36 = ssub.s32 %s30, 2
      %s37 = sadd.s32 %s30, 1
      %s38 = ssub.s32 %s30, %s37
      %p39 = scmp.eq.s32.totalorder %s38, 0
      %s41 = sadd.s32 %s40, 1
      %s42 = scalar_select %p39, %s40, %s41
      %p45 = pneg %p39
      %p46 = scmp.eq.s32.totalorder %s30, 1
      %p47 = por %p45, %p46
      %p48 = scmp.ne.s32.totalorder %s40, %s43
      %p49 = scmp.eq.s32.totalorder %s30, 0
      %p50 = por %p48, %p49
      %p51 = scmp.ne.s32.totalorder %s40, %s43
      %p52 = scmp.eq.s32.totalorder %s35, 1
      %p53 = por %p51, %p52
      %p54 = scmp.ne.s32.totalorder %s43, %s44
      %p55 = scmp.eq.s32.totalorder %s35, 0
      %p56 = por %p54, %p55
      %p57 = scmp.ne.s32.totalorder %s43, %s44
      %p58 = scmp.eq.s32.totalorder %s36, 1
      %p59 = por %p57, %p58
      %p61 = scmp.ne.s32.totalorder %s44, %s60
      %p62 = scmp.eq.s32.totalorder %s36, 0
      %p63 = por %p61, %p62
      %s64 = ssub.s32 %s30, %s37
      %p65 = scmp.eq.s32.totalorder %s64, 0
      %s67 = sadd.s32 %s66, 1
      %s68 = scalar_select %p65, %s66, %s67
      %p71 = pneg %p65
      %p72 = scmp.eq.s32.totalorder %s30, 1
      %p73 = por %p71, %p72
      %p74 = scmp.ne.s32.totalorder %s66, %s69
      %p75 = scmp.eq.s32.totalorder %s30, 0
      %p76 = por %p74, %p75
      %p77 = scmp.ne.s32.totalorder %s66, %s69
      %p78 = scmp.eq.s32.totalorder %s35, 1
      %p79 = por %p77, %p78
      %p80 = scmp.ne.s32.totalorder %s69, %s70
      %p81 = scmp.eq.s32.totalorder %s35, 0
      %p82 = por %p80, %p81
      %p83 = scmp.ne.s32.totalorder %s69, %s70
      %p84 = scmp.eq.s32.totalorder %s36, 1
      %p85 = por %p83, %p84
      %p87 = scmp.ne.s32.totalorder %s70, %s86
      %p88 = scmp.eq.s32.totalorder %s36, 0
      %p89 = por %p87, %p88
      %s90 = ssub.s32 %s30, %s37
      %p91 = scmp.eq.s32.totalorder %s90, 0
      %s93 = sadd.s32 %s92, 1
      %s94 = scalar_select %p91, %s92, %s93
      %p97 = pneg %p91
      %p98 = scmp.eq.s32.totalorder %s30, 1
      %p99 = por %p97, %p98
      %p100 = scmp.ne.s32.totalorder %s92, %s95
      %p101 = scmp.eq.s32.totalorder %s30, 0
      %p102 = por %p100, %p101
      %p103 = scmp.ne.s32.totalorder %s92, %s95
      %p104 = scmp.eq.s32.totalorder %s35, 1
      %p105 = por %p103, %p104
      %p106 = scmp.ne.s32.totalorder %s95, %s96
      %p107 = scmp.eq.s32.totalorder %s35, 0
      %p108 = por %p106, %p107
      %p109 = scmp.ne.s32.totalorder %s95, %s96
      %p110 = scmp.eq.s32.totalorder %s36, 1
      %p111 = por %p109, %p110
      %p113 = scmp.ne.s32.totalorder %s96, %s112
      %p114 = scmp.eq.s32.totalorder %s36, 0
      %p115 = por %p113, %p114
      %s116 = ssub.s32 %s30, %s37
      %p117 = scmp.eq.s32.totalorder %s116, 0
      %s119 = sadd.s32 %s118, 1
      %s120 = scalar_select %p117, %s118, %s119
      %p123 = pneg %p117
      %p124 = scmp.eq.s32.totalorder %s30, 1
      %p125 = por %p123, %p124
      %p126 = scmp.ne.s32.totalorder %s118, %s121
      %p127 = scmp.eq.s32.totalorder %s30, 0
      %p128 = por %p126, %p127
      %p129 = scmp.ne.s32.totalorder %s118, %s121
      %p130 = scmp.eq.s32.totalorder %s35, 1
      %p131 = por %p129, %p130
      %p132 = scmp.ne.s32.totalorder %s121, %s122
      %p133 = scmp.eq.s32.totalorder %s35, 0
      %p134 = por %p132, %p133
      %p135 = scmp.ne.s32.totalorder %s121, %s122
      %p136 = scmp.eq.s32.totalorder %s36, 1
      %p137 = por %p135, %p136
      %p139 = scmp.ne.s32.totalorder %s122, %s138
      %p140 = scmp.eq.s32.totalorder %s36, 0
      %p141 = por %p139, %p140
      %s142 = ssub.s32 %s30, %s37
      %p143 = scmp.eq.s32.totalorder %s142, 0
      %s145 = sadd.s32 %s144, 1
      %s146 = scalar_select %p143, %s144, %s145
      %p149 = pneg %p143
      %p150 = scmp.eq.s32.totalorder %s30, 1
      %p151 = por %p149, %p150
      %p152 = scmp.ne.s32.totalorder %s144, %s147
      %p153 = scmp.eq.s32.totalorder %s30, 0
      %p154 = por %p152, %p153
      %p155 = scmp.ne.s32.totalorder %s144, %s147
      %p156 = scmp.eq.s32.totalorder %s35, 1
      %p157 = por %p155, %p156
      %p158 = scmp.ne.s32.totalorder %s147, %s148
      %p159 = scmp.eq.s32.totalorder %s35, 0
      %p160 = por %p158, %p159
      %p161 = scmp.ne.s32.totalorder %s147, %s148
      %p162 = scmp.eq.s32.totalorder %s36, 1
      %p163 = por %p161, %p162
      %p165 = scmp.ne.s32.totalorder %s148, %s164
      %p166 = scmp.eq.s32.totalorder %s36, 0
      %p167 = por %p165, %p166
      %s168 = ssub.s32 %s30, %s37
      %p169 = scmp.eq.s32.totalorder %s168, 0
      %s171 = sadd.s32 %s170, 1
      %s172 = scalar_select %p169, %s170, %s171
      %p175 = pneg %p169
      %p176 = scmp.eq.s32.totalorder %s30, 1
      %p177 = por %p175, %p176
      %p178 = scmp.ne.s32.totalorder %s170, %s173
      %p179 = scmp.eq.s32.totalorder %s30, 0
      %p180 = por %p178, %p179
      %p181 = scmp.ne.s32.totalorder %s170, %s173
      %p182 = scmp.eq.s32.totalorder %s35, 1
      %p183 = por %p181, %p182
      %p184 = scmp.ne.s32.totalorder %s173, %s174
      %p185 = scmp.eq.s32.totalorder %s35, 0
      %p186 = por %p184, %p185
      %p187 = scmp.ne.s32.totalorder %s173, %s174
      %p188 = scmp.eq.s32.totalorder %s36, 1
      %p189 = por %p187, %p188
      %p191 = scmp.ne.s32.totalorder %s174, %s190
      %p192 = scmp.eq.s32.totalorder %s36, 0
      %p193 = por %p191, %p192
      %s194 = ssub.s32 %s30, %s37
      %p195 = scmp.eq.s32.totalorder %s194, 0
      %s197 = sadd.s32 %s196, 1
      %s198 = scalar_select %p195, %s196, %s197
      %p201 = pneg %p195
      %p202 = scmp.eq.s32.totalorder %s30, 1
      %p203 = por %p201, %p202
      %p204 = scmp.ne.s32.totalorder %s196, %s199
      %p205 = scmp.eq.s32.totalorder %s30, 0
      %p206 = por %p204, %p205
      %p207 = scmp.ne.s32.totalorder %s196, %s199
      %p208 = scmp.eq.s32.totalorder %s35, 1
      %p209 = por %p207, %p208
      %p210 = scmp.ne.s32.totalorder %s199, %s200
      %p211 = scmp.eq.s32.totalorder %s35, 0
      %p212 = por %p210, %p211
      %p213 = scmp.ne.s32.totalorder %s199, %s200
      %p214 = scmp.eq.s32.totalorder %s36, 1
      %p215 = por %p213, %p214
      %p217 = scmp.ne.s32.totalorder %s200, %s216
      %p218 = scmp.eq.s32.totalorder %s36, 0
      %p219 = por %p217, %p218
      %s220 = ssub.s32 %s30, %s37
      %p221 = scmp.eq.s32.totalorder %s220, 0
      %s223 = sadd.s32 %s222, 1
      %s224 = scalar_select %p221, %s222, %s223
      %p227 = pneg %p221
      %p228 = scmp.eq.s32.totalorder %s30, 1
      %p229 = por %p227, %p228
      %p230 = scmp.ne.s32.totalorder %s222, %s225
      %p231 = scmp.eq.s32.totalorder %s30, 0
      %p232 = por %p230, %p231
      %p233 = scmp.ne.s32.totalorder %s222, %s225
      %p234 = scmp.eq.s32.totalorder %s35, 1
      %p235 = por %p233, %p234
      %p236 = scmp.ne.s32.totalorder %s225, %s226
      %p237 = scmp.eq.s32.totalorder %s35, 0
      %p238 = por %p236, %p237
      %p239 = scmp.ne.s32.totalorder %s225, %s226
      %p240 = scmp.eq.s32.totalorder %s36, 1
      %p241 = por %p239, %p240
      %p243 = scmp.ne.s32.totalorder %s226, %s242
      %p244 = scmp.eq.s32.totalorder %s36, 0
      %p245 = por %p243, %p244
      %s247 = sadd.s32 %s246, 1
      %p250 = scmp.eq.s32.totalorder %s30, 1
      %p251 = scmp.ne.s32.totalorder %s246, %s248
      %p252 = scmp.eq.s32.totalorder %s30, 0
      %p253 = por %p251, %p252
      %p254 = scmp.ne.s32.totalorder %s246, %s248
      %p255 = scmp.eq.s32.totalorder %s35, 1
      %p256 = por %p254, %p255
      %p257 = scmp.ne.s32.totalorder %s248, %s249
      %p258 = scmp.eq.s32.totalorder %s35, 0
      %p259 = por %p257, %p258
      %p260 = scmp.ne.s32.totalorder %s248, %s249
      %p261 = scmp.eq.s32.totalorder %s36, 1
      %p262 = por %p260, %p261
      %p264 = scmp.ne.s32.totalorder %s249, %s263
      %p265 = scmp.eq.s32.totalorder %s36, 0
      %p266 = por %p264, %p265
      %p267 = scmp.le.s32.totalorder 1, %s30
      %p268 = scmp.lt.s32.totalorder %s30, 3
      %p269 = pnand %p267, %p268
      %p270 = pneg %p269
      // Predicated region
      $region9: #{tpu_custom_call.1} parent=5 // pred_check
        _
      $region10: #{tpu_custom_call.1} parent=5 // pred_check_branch
        %272 = sbr.rel (%p269) target = $region12
      $region11: #{tpu_custom_call.1} parent=5 // pred_region
        %s273 = ssub.s32 %s30, 1
      $region12: #{tpu_custom_call.1} parent=5 // pred_fallthru
        _
      %p274 = scmp.lt.s32.totalorder %s30, 2
      // Predicated region
      $region13: #{tpu_custom_call.1} parent=5 // pred_check
        %p275 = pneg %p274
      $region14: #{tpu_custom_call.1} parent=5 // pred_check_branch
        %277 = sbr.rel (%p275) target = $region16
      $region15: #{tpu_custom_call.1} parent=5 // pred_region
        // Predicated region
        $region17: #{tpu_custom_call.1} parent=15 // pred_check
          %p278 = pneg %p50
        $region18: #{tpu_custom_call.1} parent=15 // pred_check_branch
          %280 = sbr.rel (%p278) target = $region20
        $region19: #{tpu_custom_call.1} parent=15 // pred_region
          %s281 = sand.u32 %s40, 1
          %s282 = scalar_lea.sflag [#allocation4], %s281
          %s283 = sand.u32 %s40, 1
          %s284 = smul.addr %s283, 32
          %s285 = scalar_lea.vmem [#allocation3], %s284
          %s286 = smul.u32 2, %s30
          %s287 = ssub.s32 3, %s286
          %p288 = scmp.lt.s32.totalorder %s287, 2
          %s289 = scalar_select %p288, %s287, 2
          %s290 = smul.u32 128, %s289
          %s291 = smul.u32 %s290, 2
          %s293 = ssub.s32 512, %s291
          %294 = vsyncadd %s282, %s293
          %p295 = scmp.ne.s32.totalorder 0, %s291
          %s296 = smul.addr %s286, 2
          %s297 = smul.addr %s296, 128
          %s298 = scalar_lea.hbm %s0, %s297
          %s299 = smul.u32 16, %s289
          %s300 = sshll.u32 %s285, 4
          %s301 = int_to_ptr.vmem [resolvable:$true] %s300
          %s302 = sshll.u32 %s299, 4
          %306 = dma.hbm_to_vmem [thread:$0]  (%p295), %s298, %s302, %s301, %s282, 256, 256, 16
        $region20: #{tpu_custom_call.1} parent=15 // pred_fallthru
          _
        // Predicated region
        $region21: #{tpu_custom_call.1} parent=15 // pred_check
          %p307 = pneg %p76
        $region22: #{tpu_custom_call.1} parent=15 // pred_check_branch
          %309 = sbr.rel (%p307) target = $region24
        $region23: #{tpu_custom_call.1} parent=15 // pred_region
          %s310 = sand.u32 %s30, 1
          %s311 = scalar_lea.sflag [#allocation7], %s310
          %s312 = sand.u32 %s66, 1
          %s313 = smul.addr %s312, 32
          %s314 = scalar_lea.vmem [#allocation6], %s313
          %s315 = smul.u32 2, %s30
          %s316 = ssub.s32 3, %s315
          %p317 = scmp.lt.s32.totalorder %s316, 2
          %s318 = scalar_select %p317, %s316, 2
          %s319 = smul.u32 128, %s318
          %s320 = smul.u32 %s319, 2
          %s322 = ssub.s32 512, %s320
          %323 = vsyncadd %s311, %s322
          %p324 = scmp.ne.s32.totalorder 0, %s320
          %s325 = smul.addr %s315, 2
          %s326 = smul.addr %s325, 128
          %s327 = scalar_lea.hbm %s1, %s326
          %s328 = smul.u32 16, %s318
          %s329 = sshll.u32 %s314, 4
          %s330 = int_to_ptr.vmem [resolvable:$true] %s329
          %s331 = sshll.u32 %s328, 4
          %335 = dma.hbm_to_vmem [thread:$0]  (%p324), %s327, %s331, %s330, %s311, 256, 256, 16
        $region24: #{tpu_custom_call.1} parent=15 // pred_fallthru
          _
        // Predicated region
        $region25: #{tpu_custom_call.1} parent=15 // pred_check
          %p336 = pneg %p102
        $region26: #{tpu_custom_call.1} parent=15 // pred_check_branch
          %338 = sbr.rel (%p336) target = $region28
        $region27: #{tpu_custom_call.1} parent=15 // pred_region
          %s339 = sand.u32 %s30, 1
          %s340 = scalar_lea.sflag [#allocation7], %s339
          %s341 = sand.u32 %s92, 1
          %s342 = smul.addr %s341, 128
          %s343 = scalar_lea.vmem [#allocation8], %s342
          %s344 = smul.u32 2, %s30
          %s345 = ssub.s32 3, %s344
          %p346 = scmp.lt.s32.totalorder %s345, 2
          %s347 = scalar_select %p346, %s345, 2
          %s348 = smul.u32 128, %s347
          %s349 = smul.u32 %s348, 8
          %s351 = ssub.s32 2048, %s349
          %352 = vsyncadd %s340, %s351
          %p353 = scmp.ne.s32.totalorder 0, %s349
          %s354 = smul.addr %s344, 8
          %s355 = smul.addr %s354, 128
          %s356 = scalar_lea.hbm %s2, %s355
          %s357 = smul.u32 64, %s347
          %s358 = sshll.u32 %s343, 4
          %s359 = int_to_ptr.vmem [resolvable:$true] %s358
          %s360 = sshll.u32 %s357, 4
          %364 = dma.hbm_to_vmem [thread:$0]  (%p353), %s356, %s360, %s359, %s340, 1024, 1024, 64
        $region28: #{tpu_custom_call.1} parent=15 // pred_fallthru
          _
        // Predicated region
        $region29: #{tpu_custom_call.1} parent=15 // pred_check
          %p365 = pneg %p128
        $region30: #{tpu_custom_call.1} parent=15 // pred_check_branch
          %367 = sbr.rel (%p365) target = $region32
        $region31: #{tpu_custom_call.1} parent=15 // pred_region
          %s368 = sand.u32 %s30, 1
          %s369 = scalar_lea.sflag [#allocation10], %s368
          %s370 = sand.u32 %s118, 1
          %s371 = smul.addr %s370, 64
          %s372 = scalar_lea.vmem [#allocation9], %s371
          %s373 = smul.u32 2, %s30
          %s374 = ssub.s32 3, %s373
          %p375 = scmp.lt.s32.totalorder %s374, 2
          %s376 = scalar_select %p375, %s374, 2
          %s377 = smul.u32 128, %s376
          %s378 = smul.u32 %s377, 4
          %s380 = ssub.s32 1024, %s378
          %381 = vsyncadd %s369, %s380
          %p382 = scmp.ne.s32.totalorder 0, %s378
          %s383 = smul.addr %s373, 4
          %s384 = smul.addr %s383, 128
          %s385 = scalar_lea.hbm %s3, %s384
          %s386 = smul.u32 32, %s376
          %s387 = sshll.u32 %s372, 4
          %s388 = int_to_ptr.vmem [resolvable:$true] %s387
          %s389 = sshll.u32 %s386, 4
          %393 = dma.hbm_to_vmem [thread:$0]  (%p382), %s385, %s389, %s388, %s369, 512, 512, 32
        $region32: #{tpu_custom_call.1} parent=15 // pred_fallthru
          _
        // Predicated region
        $region33: #{tpu_custom_call.1} parent=15 // pred_check
          %p394 = pneg %p154
        $region34: #{tpu_custom_call.1} parent=15 // pred_check_branch
          %396 = sbr.rel (%p394) target = $region36
        $region35: #{tpu_custom_call.1} parent=15 // pred_region
          %s397 = sand.u32 %s30, 1
          %s398 = scalar_lea.sflag [#allocation10], %s397
          %s399 = sand.u32 %s144, 1
          %s400 = smul.addr %s399, 32
          %s401 = scalar_lea.vmem [#allocation11], %s400
          %s402 = smul.u32 2, %s30
          %s403 = ssub.s32 3, %s402
          %p404 = scmp.lt.s32.totalorder %s403, 2
          %s405 = scalar_select %p404, %s403, 2
          %s406 = smul.u32 128, %s405
          %s407 = smul.u32 %s406, 2
          %s409 = ssub.s32 512, %s407
          %410 = vsyncadd %s398, %s409
          %p411 = scmp.ne.s32.totalorder 0, %s407
          %s412 = smul.addr %s402, 2
          %s413 = smul.addr %s412, 128
          %s414 = scalar_lea.hbm %s4, %s413
          %s415 = smul.u32 16, %s405
          %s416 = sshll.u32 %s401, 4
          %s417 = int_to_ptr.vmem [resolvable:$true] %s416
          %s418 = sshll.u32 %s415, 4
          %422 = dma.hbm_to_vmem [thread:$0]  (%p411), %s414, %s418, %s417, %s398, 256, 256, 16
        $region36: #{tpu_custom_call.1} parent=15 // pred_fallthru
          _
        // Predicated region
        $region37: #{tpu_custom_call.1} parent=15 // pred_check
          %p423 = pneg %p180
        $region38: #{tpu_custom_call.1} parent=15 // pred_check_branch
          %425 = sbr.rel (%p423) target = $region40
        $region39: #{tpu_custom_call.1} parent=15 // pred_region
          %s426 = sand.u32 %s30, 1
          %s427 = scalar_lea.sflag [#allocation13], %s426
          %s428 = sand.u32 %s170, 1
          %s429 = smul.addr %s428, 64
          %s430 = scalar_lea.vmem [#allocation12], %s429
          %s431 = smul.u32 2, %s30
          %s432 = ssub.s32 3, %s431
          %p433 = scmp.lt.s32.totalorder %s432, 2
          %s434 = scalar_select %p433, %s432, 2
          %s435 = smul.u32 128, %s434
          %s436 = smul.u32 %s435, 4
          %s438 = ssub.s32 1024, %s436
          %439 = vsyncadd %s427, %s438
          %p440 = scmp.ne.s32.totalorder 0, %s436
          %s441 = smul.addr %s431, 4
          %s442 = smul.addr %s441, 128
          %s443 = scalar_lea.hbm %s5, %s442
          %s444 = smul.u32 32, %s434
          %s445 = sshll.u32 %s430, 4
          %s446 = int_to_ptr.vmem [resolvable:$true] %s445
          %s447 = sshll.u32 %s444, 4
          %451 = dma.hbm_to_vmem [thread:$0]  (%p440), %s443, %s447, %s446, %s427, 512, 512, 32
        $region40: #{tpu_custom_call.1} parent=15 // pred_fallthru
          _
        // Predicated region
        $region41: #{tpu_custom_call.1} parent=15 // pred_check
          %p452 = pneg %p206
        $region42: #{tpu_custom_call.1} parent=15 // pred_check_branch
          %454 = sbr.rel (%p452) target = $region44
        $region43: #{tpu_custom_call.1} parent=15 // pred_region
          %s455 = sand.u32 %s30, 1
          %s456 = scalar_lea.sflag [#allocation13], %s455
          %s457 = sand.u32 %s196, 1
          %s458 = smul.addr %s457, 64
          %s459 = scalar_lea.vmem [#allocation14], %s458
          %s460 = smul.u32 2, %s30
          %s461 = ssub.s32 3, %s460
          %p462 = scmp.lt.s32.totalorder %s461, 2
          %s463 = scalar_select %p462, %s461, 2
          %s464 = smul.u32 128, %s463
          %s465 = smul.u32 %s464, 4
          %s467 = ssub.s32 1024, %s465
          %468 = vsyncadd %s456, %s467
          %p469 = scmp.ne.s32.totalorder 0, %s465
          %s470 = smul.addr %s460, 4
          %s471 = smul.addr %s470, 128
          %s472 = scalar_lea.hbm %s6, %s471
          %s473 = smul.u32 32, %s463
          %s474 = sshll.u32 %s459, 4
          %s475 = int_to_ptr.vmem [resolvable:$true] %s474
          %s476 = sshll.u32 %s473, 4
          %480 = dma.hbm_to_vmem [thread:$0]  (%p469), %s472, %s476, %s475, %s456, 512, 512, 32
        $region44: #{tpu_custom_call.1} parent=15 // pred_fallthru
          _
        // Predicated region
        $region45: #{tpu_custom_call.1} parent=15 // pred_check
          %p481 = pneg %p232
        $region46: #{tpu_custom_call.1} parent=15 // pred_check_branch
          %483 = sbr.rel (%p481) target = $region48
        $region47: #{tpu_custom_call.1} parent=15 // pred_region
          %s484 = sand.u32 %s222, 1
          %s485 = scalar_lea.sflag [#allocation16], %s484
          %s486 = sand.u32 %s222, 1
          %s487 = smul.addr %s486, 32
          %s488 = scalar_lea.vmem [#allocation15], %s487
          %s489 = smul.u32 2, %s30
          %s490 = ssub.s32 3, %s489
          %p491 = scmp.lt.s32.totalorder %s490, 2
          %s492 = scalar_select %p491, %s490, 2
          %s493 = smul.u32 128, %s492
          %s494 = smul.u32 %s493, 2
          %s496 = ssub.s32 512, %s494
          %497 = vsyncadd %s485, %s496
          %p498 = scmp.ne.s32.totalorder 0, %s494
          %s499 = smul.addr %s489, 2
          %s500 = smul.addr %s499, 128
          %s501 = scalar_lea.hbm %s7, %s500
          %s502 = smul.u32 16, %s492
          %s503 = sshll.u32 %s488, 4
          %s504 = int_to_ptr.vmem [resolvable:$true] %s503
          %s505 = sshll.u32 %s502, 4
          %509 = dma.hbm_to_vmem [thread:$0]  (%p498), %s501, %s505, %s504, %s485, 256, 256, 16
        $region48: #{tpu_custom_call.1} parent=15 // pred_fallthru
          _
      $region16: #{tpu_custom_call.1} parent=5 // pred_fallthru
        _
      %p510 = scmp.le.s32.totalorder 1, %s30
      %p511 = scmp.lt.s32.totalorder %s30, 3
      %p512 = pnand %p510, %p511
      %p513 = pneg %p512
      // Predicated region
      $region49: #{tpu_custom_call.1} parent=5 // pred_check
        _
      $region50: #{tpu_custom_call.1} parent=5 // pred_check_branch
        %515 = sbr.rel (%p512) target = $region52
      $region51: #{tpu_custom_call.1} parent=5 // pred_region
        %s516 = ssub.s32 %s30, 1
        %s517 = sand.u32 %s43, 1
        %s518 = scalar_lea.sflag [#allocation4], %s517
        %s519 = sand.u32 %s43, 1
        %s520 = smul.addr %s519, 32
        %s521 = scalar_lea.vmem [#allocation3], %s520
        // Predicated region
        $region53: #{tpu_custom_call.1} parent=51 // pred_check
          %p522 = pneg %p56
        $region54: #{tpu_custom_call.1} parent=51 // pred_check_branch
          %524 = sbr.rel (%p522) target = $region56
        $region55: #{tpu_custom_call.1} parent=51 // pred_region
          %525 = dma.done %s518, 512
        $region56: #{tpu_custom_call.1} parent=51 // pred_fallthru
          _
        %s526 = sand.u32 %s35, 1
        %s527 = scalar_lea.sflag [#allocation7], %s526
        %s528 = sand.u32 %s69, 1
        %s529 = smul.addr %s528, 32
        %s530 = scalar_lea.vmem [#allocation6], %s529
        // Predicated region
        $region57: #{tpu_custom_call.1} parent=51 // pred_check
          %p531 = pneg %p82
        $region58: #{tpu_custom_call.1} parent=51 // pred_check_branch
          %533 = sbr.rel (%p531) target = $region60
        $region59: #{tpu_custom_call.1} parent=51 // pred_region
          %534 = dma.done %s527, 512
        $region60: #{tpu_custom_call.1} parent=51 // pred_fallthru
          _
        %s535 = sand.u32 %s35, 1
        %s536 = scalar_lea.sflag [#allocation7], %s535
        %s537 = sand.u32 %s95, 1
        %s538 = smul.addr %s537, 128
        %s539 = scalar_lea.vmem [#allocation8], %s538
        // Predicated region
        $region61: #{tpu_custom_call.1} parent=51 // pred_check
          %p540 = pneg %p108
        $region62: #{tpu_custom_call.1} parent=51 // pred_check_branch
          %542 = sbr.rel (%p540) target = $region64
        $region63: #{tpu_custom_call.1} parent=51 // pred_region
          %543 = dma.done %s536, 2048
        $region64: #{tpu_custom_call.1} parent=51 // pred_fallthru
          _
        %s544 = sand.u32 %s35, 1
        %s545 = scalar_lea.sflag [#allocation10], %s544
        %s546 = sand.u32 %s121, 1
        %s547 = smul.addr %s546, 64
        %s548 = scalar_lea.vmem [#allocation9], %s547
        // Predicated region
        $region65: #{tpu_custom_call.1} parent=51 // pred_check
          %p549 = pneg %p134
        $region66: #{tpu_custom_call.1} parent=51 // pred_check_branch
          %551 = sbr.rel (%p549) target = $region68
        $region67: #{tpu_custom_call.1} parent=51 // pred_region
          %552 = dma.done %s545, 1024
        $region68: #{tpu_custom_call.1} parent=51 // pred_fallthru
          _
        %s553 = sand.u32 %s35, 1
        %s554 = scalar_lea.sflag [#allocation10], %s553
        %s555 = sand.u32 %s147, 1
        %s556 = smul.addr %s555, 32
        %s557 = scalar_lea.vmem [#allocation11], %s556
        // Predicated region
        $region69: #{tpu_custom_call.1} parent=51 // pred_check
          %p558 = pneg %p160
        $region70: #{tpu_custom_call.1} parent=51 // pred_check_branch
          %560 = sbr.rel (%p558) target = $region72
        $region71: #{tpu_custom_call.1} parent=51 // pred_region
          %561 = dma.done %s554, 512
        $region72: #{tpu_custom_call.1} parent=51 // pred_fallthru
          _
        %s562 = sand.u32 %s35, 1
        %s563 = scalar_lea.sflag [#allocation13], %s562
        %s564 = sand.u32 %s173, 1
        %s565 = smul.addr %s564, 64
        %s566 = scalar_lea.vmem [#allocation12], %s565
        // Predicated region
        $region73: #{tpu_custom_call.1} parent=51 // pred_check
          %p567 = pneg %p186
        $region74: #{tpu_custom_call.1} parent=51 // pred_check_branch
          %569 = sbr.rel (%p567) target = $region76
        $region75: #{tpu_custom_call.1} parent=51 // pred_region
          %570 = dma.done %s563, 1024
        $region76: #{tpu_custom_call.1} parent=51 // pred_fallthru
          _
        %s571 = sand.u32 %s35, 1
        %s572 = scalar_lea.sflag [#allocation13], %s571
        %s573 = sand.u32 %s199, 1
        %s574 = smul.addr %s573, 64
        %s575 = scalar_lea.vmem [#allocation14], %s574
        // Predicated region
        $region77: #{tpu_custom_call.1} parent=51 // pred_check
          %p576 = pneg %p212
        $region78: #{tpu_custom_call.1} parent=51 // pred_check_branch
          %578 = sbr.rel (%p576) target = $region80
        $region79: #{tpu_custom_call.1} parent=51 // pred_region
          %579 = dma.done %s572, 1024
        $region80: #{tpu_custom_call.1} parent=51 // pred_fallthru
          _
        %s580 = sand.u32 %s225, 1
        %s581 = scalar_lea.sflag [#allocation16], %s580
        %s582 = sand.u32 %s225, 1
        %s583 = smul.addr %s582, 32
        %s584 = scalar_lea.vmem [#allocation15], %s583
        // Predicated region
        $region81: #{tpu_custom_call.1} parent=51 // pred_check
          %p585 = pneg %p238
        $region82: #{tpu_custom_call.1} parent=51 // pred_check_branch
          %587 = sbr.rel (%p585) target = $region84
        $region83: #{tpu_custom_call.1} parent=51 // pred_region
          %588 = dma.done %s581, 512
        $region84: #{tpu_custom_call.1} parent=51 // pred_fallthru
          _
        %s589 = sand.u32 %s43, 1
        %s590 = scalar_lea.sflag [#allocation4], %s589
        %s591 = sand.u32 %s43, 1
        %s592 = smul.addr %s591, 32
        %s593 = scalar_lea.vmem [#allocation3], %s592
        %p594 = pneg %p56
        %p595 = pneg %p53
        %s596 = sand.u32 %s35, 1
        %s597 = scalar_lea.sflag [#allocation7], %s596
        %s598 = sand.u32 %s69, 1
        %s599 = smul.addr %s598, 32
        %s600 = scalar_lea.vmem [#allocation6], %s599
        %p601 = pneg %p82
        %p602 = pneg %p79
        %s603 = sand.u32 %s35, 1
        %s604 = scalar_lea.sflag [#allocation7], %s603
        %s605 = sand.u32 %s95, 1
        %s606 = smul.addr %s605, 128
        %s607 = scalar_lea.vmem [#allocation8], %s606
        %p608 = pneg %p108
        %p609 = pneg %p105
        %s610 = sand.u32 %s35, 1
        %s611 = scalar_lea.sflag [#allocation10], %s610
        %s612 = sand.u32 %s121, 1
        %s613 = smul.addr %s612, 64
        %s614 = scalar_lea.vmem [#allocation9], %s613
        %p615 = pneg %p134
        %p616 = pneg %p131
        %s617 = sand.u32 %s35, 1
        %s618 = scalar_lea.sflag [#allocation10], %s617
        %s619 = sand.u32 %s147, 1
        %s620 = smul.addr %s619, 32
        %s621 = scalar_lea.vmem [#allocation11], %s620
        %p622 = pneg %p160
        %p623 = pneg %p157
        %s624 = sand.u32 %s35, 1
        %s625 = scalar_lea.sflag [#allocation13], %s624
        %s626 = sand.u32 %s173, 1
        %s627 = smul.addr %s626, 64
        %s628 = scalar_lea.vmem [#allocation12], %s627
        %p629 = pneg %p186
        %p630 = pneg %p183
        %s631 = sand.u32 %s35, 1
        %s632 = scalar_lea.sflag [#allocation13], %s631
        %s633 = sand.u32 %s199, 1
        %s634 = smul.addr %s633, 64
        %s635 = scalar_lea.vmem [#allocation14], %s634
        %p636 = pneg %p212
        %p637 = pneg %p209
        %s638 = sand.u32 %s225, 1
        %s639 = scalar_lea.sflag [#allocation16], %s638
        %s640 = sand.u32 %s225, 1
        %s641 = smul.addr %s640, 32
        %s642 = scalar_lea.vmem [#allocation15], %s641
        %p643 = pneg %p238
        %p644 = pneg %p235
        %p645 = pneg %p259
        %p646 = pneg %p256
        %s647 = smul.u32 2, %s35
        %s648 = ssub.s32 3, %s647
        %p649 = scmp.lt.s32.totalorder %s648, 2
        %s650 = scalar_select %p649, %s648, 2
        %s651 = smul.u32 128, %s650
        %s652 = smul.u32 %s651, 2
        %s653 = smul.u32 2, %s35
        %s654 = ssub.s32 3, %s653
        %p655 = scmp.lt.s32.totalorder %s654, 2
        %s656 = scalar_select %p655, %s654, 2
        %s657 = smul.u32 128, %s656
        %s658 = smul.u32 %s657, 2
        %s659 = smul.u32 2, %s35
        %s660 = ssub.s32 3, %s659
        %p661 = scmp.lt.s32.totalorder %s660, 2
        %s662 = scalar_select %p661, %s660, 2
        %s663 = smul.u32 128, %s662
        %s664 = smul.u32 %s663, 8
        %s665 = smul.u32 2, %s35
        %s666 = ssub.s32 3, %s665
        %p667 = scmp.lt.s32.totalorder %s666, 2
        %s668 = scalar_select %p667, %s666, 2
        %s669 = smul.u32 128, %s668
        %s670 = smul.u32 %s669, 4
        %s671 = smul.u32 2, %s35
        %s672 = ssub.s32 3, %s671
        %p673 = scmp.lt.s32.totalorder %s672, 2
        %s674 = scalar_select %p673, %s672, 2
        %s675 = smul.u32 128, %s674
        %s676 = smul.u32 %s675, 2
        %s677 = smul.u32 2, %s35
        %s678 = ssub.s32 3, %s677
        %p679 = scmp.lt.s32.totalorder %s678, 2
        %s680 = scalar_select %p679, %s678, 2
        %s681 = smul.u32 128, %s680
        %s682 = smul.u32 %s681, 4
        %s683 = smul.u32 2, %s35
        %s684 = ssub.s32 3, %s683
        %p685 = scmp.lt.s32.totalorder %s684, 2
        %s686 = scalar_select %p685, %s684, 2
        %s687 = smul.u32 128, %s686
        %s688 = smul.u32 %s687, 4
        %s689 = smul.u32 2, %s35
        %s690 = ssub.s32 3, %s689
        %p691 = scmp.lt.s32.totalorder %s690, 2
        %s692 = scalar_select %p691, %s690, 2
        %s693 = smul.u32 128, %s692
        %s694 = smul.u32 %s693, 2
        %p695 = scmp.eq.s32.totalorder %s35, 0
        // Predicated region
        $region85: #{tpu_custom_call.1} parent=51 // pred_check
          %p696 = pneg %p695
        $region86: #{tpu_custom_call.1} parent=51 // pred_check_branch
          %698 = sbr.rel (%p696) target = $region88
        $region87: #{tpu_custom_call.1} parent=51 // pred_region
          %699 = vst [vmem:[#allocation2] sm:$0xff] 0.0
          %700 = vst [vmem:[#allocation2 + $0x8] sm:$0xff] 0.0
          %701 = vst [vmem:[#allocation2 + $0x10] sm:$0xff] 0.0
          %702 = vst [vmem:[#allocation2 + $0x18] sm:$0xff] 0.0
          %703 = vst [vmem:[#allocation2 + $0x20] sm:$0xff] 0.0
          %704 = vst [vmem:[#allocation2 + $0x28] sm:$0xff] 0.0
          %705 = vst [vmem:[#allocation2 + $0x30] sm:$0xff] 0.0
          %706 = vst [vmem:[#allocation2 + $0x38] sm:$0xff] 0.0
        $region88: #{tpu_custom_call.1} parent=51 // pred_fallthru
          _
        loop: start=0, step=1, limit=2
        $region89: #{tpu_custom_call.1} parent=51 // loop_pre_header
          _
        $region90: #{tpu_custom_call.1} parent=51 // loop_header
          %s708 = sphi 0, %s712
          %p709 = scmp.ge.s32.totalorder %s708, 2
        $region91: #{tpu_custom_call.1} parent=51 // loop_header_branch
          %711 = sbr.rel (%p709) target = $region95
        $region92: #{tpu_custom_call.1} parent=51 // loop_body
          %s713 = smul.u32 %s708, 8
          %s714 = smul.u32 %s35, 16
          %s715 = sadd.s32 %s714, %s713
          %v716 = vlaneseq
          %v717 = vshrl.u32 %v716, 7
          %v718 = vstv %s715
          %v719 = vadd.s32 %v717, %v718
          %vm720 = vcmp.lt.s32.totalorder %v719, 18
          %s721 = sshra.s32 %s713, 3
          %s722 = sand.u32 %s713, 7
          %s723 = smul.u32 %s721, 2
          %s724 = smul.addr %s723, 8
          %s725 = scalar_lea.vmem %s521, %s724 [#allocation3]
          %v726 = vld [vmem:[%s725] sm:$0xff]
          %v727 = vld [vmem:[%s725 + $0x8] sm:$0xff]
          %s728 = smul.addr %s723, 8
          %s729 = scalar_lea.vmem %s530, %s728 [#allocation6]
          %v730 = vld [vmem:[%s729] sm:$0xff]
          %v731 = vld [vmem:[%s729 + $0x8] sm:$0xff]
          %vm732 = vcmp.ne.f32.partialorder %v730, %v730
          %vm733 = vcmp.ne.f32.partialorder %v731, %v731
          %vm734 = vmxor %vm732, 1
          %vm735 = vmxor %vm733, 1
          %v736 = vsel %vm734, 1, 0
          %v737 = vsel %vm735, 1, 0
          %v738 = vcvt.s32.f32 %v736
          %v739 = vcvt.s32.f32 %v737
          %v740 = vsel %vm734, %v730, 0.0
          %v741 = vsel %vm735, %v731, 0.0
          %vm742 = vcmp.eq.f32.partialorder %v740, 1.0
          %vm743 = vcmp.eq.f32.partialorder %v741, 1.0
          %v744 = vsub.f32 0.0, %v726
          %v745 = vsub.f32 0.0, %v727
          %v746 = vsel %vm742, %v726, %v744
          %v747 = vsel %vm743, %v727, %v745
          %v748 = vand.u32 2147483647, %v746
          %v749 = vand.u32 2147483647, %v747
          %v750 = vsub.f32 0.0, %v748
          %v751 = vsub.f32 0.0, %v749
          %v752 = vmul.f32 %v750, 1.442695
          %v753 = vpow.pop %v752
          %v754 = vmul.f32 %v751, 1.442695
          %v755 = vpow.pop %v754
          %v756 = vsub.f32 0.0, %v746
          %v757 = vsub.f32 0.0, %v747
          %v758 = vmax.f32 %v756, 0.0
          %v759 = vmax.f32 %v757, 0.0
          %v760 = vadd.f32 %v753, 1.0
          %v761 = vlog2.pop %v760
          %v762 = vmul.f32 %v761, 0.6931472
          %v763 = vmul.f32 -0.5, %v753
          %v764 = vadd.f32 %v763, 1.0
          %v765 = vmul.f32 %v764, %v753
          %v766 = vand.u32 2147483647, %v753
          %vm767 = vcmp.lt.f32.partialorder %v766, 0.0004427343
          %v768 = vsel %vm767, %v765, %v762
          %v769 = vadd.f32 %v755, 1.0
          %v770 = vlog2.pop %v769
          %v771 = vmul.f32 %v770, 0.6931472
          %v772 = vmul.f32 -0.5, %v755
          %v773 = vadd.f32 %v772, 1.0
          %v774 = vmul.f32 %v773, %v755
          %v775 = vand.u32 2147483647, %v755
          %vm776 = vcmp.lt.f32.partialorder %v775, 0.0004427343
          %v777 = vsel %vm776, %v774, %v771
          %v778 = vadd.f32 %v758, %v768
          %v779 = vadd.f32 %v759, %v777
          %v780 = vadd.f32 %v753, 1.0
          %v781 = vadd.f32 %v755, 1.0
          %v782 = vrcp.pop %v780
          %v783 = vrcp.pop %v781
          %v784 = vmul.f32 %v780, %v782
          %v785 = vmul.f32 %v781, %v783
          %v786 = vsub.f32 2.0, %v784
          %v787 = vsub.f32 2.0, %v785
          %v788 = vmul.f32 %v782, %v786
          %v789 = vmul.f32 %v783, %v787
          %vm790 = vcmp.ge.f32.partialorder %v746, 0.0
          %vm791 = vcmp.ge.f32.partialorder %v747, 0.0
          %v792 = vmul.f32 %v753, %v788
          %v793 = vmul.f32 %v755, %v789
          %v794 = vsel %vm790, %v792, %v788
          %v795 = vsel %vm791, %v793, %v789
          %v796 = vld [vmem:[#allocation2] sm:$0xff]
          %v797 = vld [vmem:[#allocation2 + $0x8] sm:$0xff]
          %v798 = vmul.f32 %v778, %v794
          %v799 = vmul.f32 %v779, %v795
          %v800 = vmul.f32 %v798, %v738
          %v801 = vmul.f32 %v799, %v739
          %v802 = vsel %vm720, %v800, 0.0
          %v803 = vsel %vm720, %v801, 0.0
          %v804 = vadd.f32 %v796, %v802
          %v805 = vadd.f32 %v797, %v803
          %806 = vst [vmem:[#allocation2] sm:$0xff] %v804
          %807 = vst [vmem:[#allocation2 + $0x8] sm:$0xff] %v805
          %s808 = smul.u32 %s721, 8
          %s809 = smul.addr %s808, 8
          %s810 = scalar_lea.vmem %s539, %s809 [#allocation8]
          %v811 = vld [vmem:[%s810] sm:$0xff]
          %v812 = vld [vmem:[%s810 + $0x8] sm:$0xff]
          %v813 = vld [vmem:[%s810 + $0x10] sm:$0xff]
          %v814 = vld [vmem:[%s810 + $0x18] sm:$0xff]
          %s815 = smul.u32 %s721, 4
          %s816 = smul.addr %s815, 8
          %s817 = scalar_lea.vmem %s548, %s816 [#allocation9]
          %v818 = vld [vmem:[%s817] sm:$0xff]
          %v819 = vld [vmem:[%s817 + $0x8] sm:$0xff]
          %s820 = smul.addr %s815, 8
          %s821 = scalar_lea.vmem %s566, %s820 [#allocation12]
          %v822 = vld [vmem:[%s821] sm:$0xff]
          %v823 = vld [vmem:[%s821 + $0x8] sm:$0xff]
          %v824 = vld [vmem:[%s821 + $0x10] sm:$0xff]
          %v825 = vld [vmem:[%s821 + $0x18] sm:$0xff]
          %vm826 = vcmp.ne.f32.partialorder %v822, %v822
          %vm827 = vcmp.ne.f32.partialorder %v823, %v823
          %vm828 = vmxor %vm826, 1
          %vm829 = vmxor %vm827, 1
          %v830 = vsel %vm828, 1, 0
          %v831 = vsel %vm829, 1, 0
          %v832 = vcvt.s32.f32 %v830
          %v833 = vcvt.s32.f32 %v831
          %v834 = vsel %vm828, %v822, 0.0
          %v835 = vsel %vm829, %v823, 0.0
          %v836 = vsel %vm828, %v824, 0.0
          %v837 = vsel %vm829, %v825, 0.0
          %v838 = vsub.f32 %v811, %v834
          %v839 = vsub.f32 %v812, %v835
          %v840 = vsub.f32 %v813, %v836
          %v841 = vsub.f32 %v814, %v837
          %v842 = vmul.f32 %v838, %v838
          %v843 = vmul.f32 %v839, %v839
          %v844 = vmul.f32 %v840, %v840
          %v845 = vmul.f32 %v841, %v841
          %v846 = vadd.f32 %v842, %v844
          %v847 = vadd.f32 %v843, %v845
          %v848 = vrsqrt.pop %v846
          %v849 = vmul.f32 %v846, %v848
          %vm850 = vcmp.eq.f32.partialorder %v846, inf
          %v851 = vsel %vm850, %v846, %v849
          %vm852 = vcmp.eq.f32.partialorder %v846, 0.0
          %v853 = vand.u32 %v846, 2147483648
          %v854 = vsel %vm852, %v853, %v851
          %v855 = vrsqrt.pop %v847
          %v856 = vmul.f32 %v847, %v855
          %vm857 = vcmp.eq.f32.partialorder %v847, inf
          %v858 = vsel %vm857, %v847, %v856
          %vm859 = vcmp.eq.f32.partialorder %v847, 0.0
          %v860 = vand.u32 %v847, 2147483648
          %v861 = vsel %vm859, %v860, %v858
          %v862 = vmul.f32 %v818, 0.33333334
          %v863 = vmul.f32 %v819, 0.33333334
          %v864 = vtanh.pop %v862
          %v865 = vtanh.pop %v863
          %v866 = vmul.f32 %v864, 3.0
          %v867 = vmul.f32 %v865, 3.0
          %s868 = scalar_lea.vmem [#allocation2], 16
          %v869 = vld [vmem:[%s868] sm:$0xff]
          %v870 = vld [vmem:[%s868 + $0x8] sm:$0xff]
          %v871 = vadd.f32 %v866, 0.694
          %v872 = vadd.f32 %v867, 0.694
          %v873 = vsub.f32 0.0, %v866
          %v874 = vsub.f32 0.0, %v867
          %v875 = vmul.f32 %v873, 1.442695
          %v876 = vpow.pop %v875
          %v877 = vmul.f32 %v874, 1.442695
          %v878 = vpow.pop %v877
          %v879 = vmul.f32 %v854, %v876
          %v880 = vmul.f32 %v861, %v878
          %v881 = vadd.f32 %v871, %v879
          %v882 = vadd.f32 %v872, %v880
          %v883 = vmul.f32 %v881, %v832
          %v884 = vmul.f32 %v882, %v833
          %v885 = vsel %vm720, %v883, 0.0
          %v886 = vsel %vm720, %v884, 0.0
          %v887 = vadd.f32 %v869, %v885
          %v888 = vadd.f32 %v870, %v886
          %889 = vst [vmem:[%s868] sm:$0xff] %v887
          %890 = vst [vmem:[%s868 + $0x8] sm:$0xff] %v888
          %v891 = vld [vmem:[%s810 + $0x20] sm:$0xff]
          %v892 = vld [vmem:[%s810 + $0x28] sm:$0xff]
          %v893 = vld [vmem:[%s810 + $0x30] sm:$0xff]
          %v894 = vld [vmem:[%s810 + $0x38] sm:$0xff]
          %v895 = vld [vmem:[%s817 + $0x10] sm:$0xff]
          %v896 = vld [vmem:[%s817 + $0x18] sm:$0xff]
          %s897 = smul.addr %s815, 8
          %s898 = scalar_lea.vmem %s575, %s897 [#allocation14]
          %v899 = vld [vmem:[%s898] sm:$0xff]
          %v900 = vld [vmem:[%s898 + $0x8] sm:$0xff]
          %v901 = vld [vmem:[%s898 + $0x10] sm:$0xff]
          %v902 = vld [vmem:[%s898 + $0x18] sm:$0xff]
          %vm903 = vcmp.ne.f32.partialorder %v899, %v899
          %vm904 = vcmp.ne.f32.partialorder %v900, %v900
          %vm905 = vmxor %vm903, 1
          %vm906 = vmxor %vm904, 1
          %v907 = vsel %vm905, 1, 0
          %v908 = vsel %vm906, 1, 0
          %v909 = vcvt.s32.f32 %v907
          %v910 = vcvt.s32.f32 %v908
          %v911 = vsel %vm905, %v899, 0.0
          %v912 = vsel %vm906, %v900, 0.0
          %v913 = vsel %vm905, %v901, 0.0
          %v914 = vsel %vm906, %v902, 0.0
          %v915 = vsub.f32 %v891, %v911
          %v916 = vsub.f32 %v892, %v912
          %v917 = vsub.f32 %v893, %v913
          %v918 = vsub.f32 %v894, %v914
          %v919 = vmul.f32 %v915, %v915
          %v920 = vmul.f32 %v916, %v916
          %v921 = vmul.f32 %v917, %v917
          %v922 = vmul.f32 %v918, %v918
          %v923 = vadd.f32 %v919, %v921
          %v924 = vadd.f32 %v920, %v922
          %v925 = vrsqrt.pop %v923
          %v926 = vmul.f32 %v923, %v925
          %vm927 = vcmp.eq.f32.partialorder %v923, inf
          %v928 = vsel %vm927, %v923, %v926
          %vm929 = vcmp.eq.f32.partialorder %v923, 0.0
          %v930 = vand.u32 %v923, 2147483648
          %v931 = vsel %vm929, %v930, %v928
          %v932 = vrsqrt.pop %v924
          %v933 = vmul.f32 %v924, %v932
          %vm934 = vcmp.eq.f32.partialorder %v924, inf
          %v935 = vsel %vm934, %v924, %v933
          %vm936 = vcmp.eq.f32.partialorder %v924, 0.0
          %v937 = vand.u32 %v924, 2147483648
          %v938 = vsel %vm936, %v937, %v935
          %v939 = vmul.f32 %v895, 0.33333334
          %v940 = vmul.f32 %v896, 0.33333334
          %v941 = vtanh.pop %v939
          %v942 = vtanh.pop %v940
          %v943 = vmul.f32 %v941, 3.0
          %v944 = vmul.f32 %v942, 3.0
          %s945 = scalar_lea.vmem [#allocation2], 32
          %v946 = vld [vmem:[%s945] sm:$0xff]
          %v947 = vld [vmem:[%s945 + $0x8] sm:$0xff]
          %v948 = vadd.f32 %v943, 0.694
          %v949 = vadd.f32 %v944, 0.694
          %v950 = vsub.f32 0.0, %v943
          %v951 = vsub.f32 0.0, %v944
          %v952 = vmul.f32 %v950, 1.442695
          %v953 = vpow.pop %v952
          %v954 = vmul.f32 %v951, 1.442695
          %v955 = vpow.pop %v954
          %v956 = vmul.f32 %v931, %v953
          %v957 = vmul.f32 %v938, %v955
          %v958 = vadd.f32 %v948, %v956
          %v959 = vadd.f32 %v949, %v957
          %v960 = vmul.f32 %v958, %v909
          %v961 = vmul.f32 %v959, %v910
          %v962 = vsel %vm720, %v960, 0.0
          %v963 = vsel %vm720, %v961, 0.0
          %v964 = vadd.f32 %v946, %v962
          %v965 = vadd.f32 %v947, %v963
          %966 = vst [vmem:[%s945] sm:$0xff] %v964
          %967 = vst [vmem:[%s945 + $0x8] sm:$0xff] %v965
          %s968 = smul.addr %s723, 8
          %s969 = scalar_lea.vmem %s557, %s968 [#allocation11]
          %v970 = vld [vmem:[%s969] sm:$0xff]
          %v971 = vld [vmem:[%s969 + $0x8] sm:$0xff]
          %s972 = smul.addr %s723, 8
          %s973 = scalar_lea.vmem %s584, %s972 [#allocation15]
          %v974 = vld [vmem:[%s973] sm:$0xff]
          %v975 = vld [vmem:[%s973 + $0x8] sm:$0xff]
          %vm976 = vcmp.ne.f32.partialorder %v974, %v974
          %vm977 = vcmp.ne.f32.partialorder %v975, %v975
          %vm978 = vmxor %vm976, 1
          %vm979 = vmxor %vm977, 1
          %v980 = vsel %vm978, 1, 0
          %v981 = vsel %vm979, 1, 0
          %v982 = vcvt.s32.f32 %v980
          %v983 = vcvt.s32.f32 %v981
          %v984 = vsel %vm978, %v974, 1.0
          %v985 = vsel %vm979, %v975, 1.0
          %s986 = scalar_lea.vmem [#allocation2], 48
          %v987 = vld [vmem:[%s986] sm:$0xff]
          %v988 = vld [vmem:[%s986 + $0x8] sm:$0xff]
          %v989 = vlog2.pop %v984
          %v990 = vmul.f32 %v989, 0.6931472
          %v991 = vlog2.pop %v985
          %v992 = vmul.f32 %v991, 0.6931472
          %v993 = vsub.f32 %v970, %v990
          %v994 = vsub.f32 %v971, %v992
          %v995 = vand.u32 2147483647, %v993
          %v996 = vand.u32 2147483647, %v994
          %v997 = vmul.f32 %v995, %v982
          %v998 = vmul.f32 %v996, %v983
          %v999 = vsel %vm720, %v997, 0.0
          %v1000 = vsel %vm720, %v998, 0.0
          %v1001 = vadd.f32 %v987, %v999
          %v1002 = vadd.f32 %v988, %v1000
          %1003 = vst [vmem:[%s986] sm:$0xff] %v1001
          %1004 = vst [vmem:[%s986 + $0x8] sm:$0xff] %v1002
        $region93: #{tpu_custom_call.1} parent=51 // loop_footer
          %s712 = sadd.s32 1, %s708
        $region94: #{tpu_custom_call.1} parent=51 // loop_footer_branch
          %707 = sbr.rel target = $region90
        $region95: #{tpu_custom_call.1} parent=51 // loop_exit
          _
        %p1005 = scmp.eq.s32.totalorder %s35, 1
        // Predicated region
        $region96: #{tpu_custom_call.1} parent=51 // pred_check
          %p1006 = pneg %p1005
        $region97: #{tpu_custom_call.1} parent=51 // pred_check_branch
          %1008 = sbr.rel (%p1006) target = $region99
        $region98: #{tpu_custom_call.1} parent=51 // pred_region
          %v1009 = vld [vmem:[#allocation2] sm:$0xff]
          %v1010 = vld [vmem:[#allocation2 + $0x8] sm:$0xff]
          %v1011 = vadd.f32 %v1009, %v1010
          %1012 = vadd.xlane.f32.xlu0 %v1011
          %v1013 = vpop.xlane.xlu0 %1012
          %v1014 = vrot.slane %v1013, 4
          %v1015 = vadd.f32 %v1013, %v1014
          %v1016 = vrot.slane %v1015, 2
          %v1017 = vadd.f32 %v1015, %v1016
          %v1018 = vrot.slane %v1017, 1
          %v1019 = vadd.f32 %v1017, %v1018
          %s1020 = vtos %v1019
          %s1021 = smul.f32 %s1020, 0.0005
          %s1022 = scalar_lea.smem [#allocation17], 0
          %1023 = sst [smem:[%s1022]] %s1021
          %s1024 = scalar_lea.vmem [#allocation2], 16
          %v1025 = vld [vmem:[%s1024] sm:$0xff]
          %v1026 = vld [vmem:[%s1024 + $0x8] sm:$0xff]
          %v1027 = vadd.f32 %v1025, %v1026
          %1028 = vadd.xlane.f32.xlu0 %v1027
          %v1029 = vpop.xlane.xlu0 %1028
          %v1030 = vrot.slane %v1029, 4
          %v1031 = vadd.f32 %v1029, %v1030
          %v1032 = vrot.slane %v1031, 2
          %v1033 = vadd.f32 %v1031, %v1032
          %v1034 = vrot.slane %v1033, 1
          %v1035 = vadd.f32 %v1033, %v1034
          %s1036 = vtos %v1035
          %s1037 = smul.f32 %s1036, 0.0005
          %s1038 = scalar_lea.smem [#allocation17], 1
          %1039 = sst [smem:[%s1038]] %s1037
          %s1040 = scalar_lea.vmem [#allocation2], 32
          %v1041 = vld [vmem:[%s1040] sm:$0xff]
          %v1042 = vld [vmem:[%s1040 + $0x8] sm:$0xff]
          %v1043 = vadd.f32 %v1041, %v1042
          %1044 = vadd.xlane.f32.xlu0 %v1043
          %v1045 = vpop.xlane.xlu0 %1044
          %v1046 = vrot.slane %v1045, 4
          %v1047 = vadd.f32 %v1045, %v1046
          %v1048 = vrot.slane %v1047, 2
          %v1049 = vadd.f32 %v1047, %v1048
          %v1050 = vrot.slane %v1049, 1
          %v1051 = vadd.f32 %v1049, %v1050
          %s1052 = vtos %v1051
          %s1053 = smul.f32 %s1052, 0.0005
          %s1054 = scalar_lea.smem [#allocation17], 2
          %1055 = sst [smem:[%s1054]] %s1053
          %s1056 = scalar_lea.vmem [#allocation2], 48
          %v1057 = vld [vmem:[%s1056] sm:$0xff]
          %v1058 = vld [vmem:[%s1056 + $0x8] sm:$0xff]
          %v1059 = vadd.f32 %v1057, %v1058
          %1060 = vadd.xlane.f32.xlu0 %v1059
          %v1061 = vpop.xlane.xlu0 %1060
          %v1062 = vrot.slane %v1061, 4
          %v1063 = vadd.f32 %v1061, %v1062
          %v1064 = vrot.slane %v1063, 2
          %v1065 = vadd.f32 %v1063, %v1064
          %v1066 = vrot.slane %v1065, 1
          %v1067 = vadd.f32 %v1065, %v1066
          %s1068 = vtos %v1067
          %s1069 = smul.f32 %s1068, 0.005
          %s1070 = scalar_lea.smem [#allocation17], 3
          %1071 = sst [smem:[%s1070]] %s1069
        $region99: #{tpu_custom_call.1} parent=51 // pred_fallthru
          _
        // Predicated region
        $region100: #{tpu_custom_call.1} parent=51 // pred_check
          %p1072 = pneg %p256
        $region101: #{tpu_custom_call.1} parent=51 // pred_check_branch
          %1074 = sbr.rel (%p1072) target = $region103
        $region102: #{tpu_custom_call.1} parent=51 // pred_region
          %s1076 = ssub.s32 16, 16
          %1077 = vsyncadd [#allocation5], %s1076
          %1080 = dma.smem_to_hbm [#allocation17], 16, %s8, [#allocation5]
        $region103: #{tpu_custom_call.1} parent=51 // pred_fallthru
          _
        // Predicated region
        $region104: #{tpu_custom_call.1} parent=51 // pred_check
          %p1081 = pneg %p256
        $region105: #{tpu_custom_call.1} parent=51 // pred_check_branch
          %1083 = sbr.rel (%p1081) target = $region107
        $region106: #{tpu_custom_call.1} parent=51 // pred_region
          %1084 = dma.done [#allocation5], 16
        $region107: #{tpu_custom_call.1} parent=51 // pred_fallthru
          _
        %1085 = sfence
      $region52: #{tpu_custom_call.1} parent=5 // pred_fallthru
        _
      %p1086 = scmp.le.s32.totalorder 2, %s30
      // Predicated region
      $region108: #{tpu_custom_call.1} parent=5 // pred_check
        %p1087 = pneg %p1086
      $region109: #{tpu_custom_call.1} parent=5 // pred_check_branch
        %1089 = sbr.rel (%p1087) target = $region111
      $region110: #{tpu_custom_call.1} parent=5 // pred_region
        %s1090 = ssub.s32 %s30, 2
      $region111: #{tpu_custom_call.1} parent=5 // pred_fallthru
        _
    $region6: #{tpu_custom_call.1} parent=1 // loop_footer
      %s34 = sadd.s32 1, %s30
    $region7: #{tpu_custom_call.1} parent=1 // loop_footer_branch
      %29 = sbr.rel target = $region3
    $region8: #{tpu_custom_call.1} parent=1 // loop_exit
      _
    %1091 = vsyncpa [#allocation4], 1
    %s1092 = scalar_lea.sflag [#allocation4], 1
    %1093 = vsyncpa %s1092, 1
    %1094 = vsyncpa [#allocation7], 1
    %s1095 = scalar_lea.sflag [#allocation7], 1
    %1096 = vsyncpa %s1095, 1
    %1097 = vsyncpa [#allocation10], 1
    %s1098 = scalar_lea.sflag [#allocation10], 1
    %1099 = vsyncpa %s1098, 1
    %1100 = vsyncpa [#allocation13], 1
    %s1101 = scalar_lea.sflag [#allocation13], 1
    %1102 = vsyncpa %s1101, 1
    %1103 = vsyncpa [#allocation16], 1
    %s1104 = scalar_lea.sflag [#allocation16], 1
    %1105 = vsyncpa %s1104, 1
    %1106 = vsyncpa [#allocation5], 1
    %s1107 = scalar_lea.sflag [#allocation5], 1
    %1108 = vsyncpa %s1107, 1

</llo_original>
